<compile_context>
chip_gen: v7x
topology: tpu7x:2x2x1
jax: 0.10.0
libtpu: 0.0.40
codegen_flags: <defaults>
</compile_context>

<pallas_src>
import functools

import jax
import jax.numpy as jnp
from jax.experimental import pallas as pl
from jax.experimental.pallas import tpu as pltpu


def _attention_kernel(x_ref, wqkv_ref, bqkv_ref, wout_ref, bout_ref,
                      hmask_ref, gsum_ref, o_ref,
                      *, Bt, P, D, Dp, HP, mm_dtype):
    """One grid step = a block of `Bt` batch elements (R = Bt*P token rows)."""
    R = Bt * P
    GP = HP * P

    x2 = x_ref[...].reshape(R, D).astype(mm_dtype)

    # Single fused QKV projection; columns are [v | q | k], each zero-padded to
    # Dp = 128 lanes, so the three splits below are exact 128-lane tile slices.
    # The softmax scale is already folded into the q columns by the wrapper.
    qkv = jnp.dot(x2, wqkv_ref[...], preferred_element_type=jnp.float32) + bqkv_ref[...]
    v3 = qkv[:, 0 * Dp:1 * Dp].astype(mm_dtype).reshape(Bt, P, Dp)
    q3 = qkv[:, 1 * Dp:2 * Dp].astype(mm_dtype).reshape(Bt, P, Dp)
    k3 = qkv[:, 2 * Dp:3 * Dp].astype(mm_dtype).reshape(Bt, P, Dp)

    # Head-batched attention via a block-diagonal expansion (replaces the old
    # per-head loop): big[b, h*P + j, d] = {k,v}[b, j, d] iff d // S == h, so one
    # batched matmul per (q,k) and (attn,v) pair computes every head at once and
    # every operand stays 128-lane dense.
    hmask = hmask_ref[...]                               # (GP, Dp) 0/1 head selector
    k_big = jnp.concatenate([k3] * HP, axis=1) * hmask   # (Bt, GP, Dp)
    v_big = jnp.concatenate([v3] * HP, axis=1) * hmask   # (Bt, GP, Dp)

    # Scores for all heads: s[b, i, h*P + j] = sum_{d in head h} q[b,i,d] * k[b,j,d].
    s = jnp.einsum("bid,bcd->bic", q3, k_big,
                   preferred_element_type=jnp.float32)   # (Bt, P, GP) f32

    # Per-head softmax in f32, kept in the lane-dense (R, GP) layout.  The max is
    # taken over the whole row (all heads); it is constant within each head's
    # P-lane group, so the per-group softmax is mathematically unchanged, and it
    # avoids a lane-splitting reshape.  Per-head denominators come from a
    # block-diagonal ones matmul (gsum), also in f32.
    s2 = s.reshape(R, GP)
    s2 = s2 - jnp.max(s2, axis=-1, keepdims=True)
    p2 = jnp.exp(s2)
    denom = jnp.dot(p2, gsum_ref[...], preferred_element_type=jnp.float32)  # (R, GP)
    # TODO(synk): pl.reciprocal(approx=True) leaves ~2^-12 relative error on the
    # softmax normalization; switch to an exact divide if this feeds training.
    attn = p2 * pl.reciprocal(jnp.maximum(denom, 1e-30), approx=True)
    attn3 = attn.reshape(Bt, P, GP).astype(mm_dtype)

    # out[b, i, d] = sum_j attn[b, i, head(d)*P + j] * v[b, j, d]; this is already
    # in the concatenated (c h s) layout expected by the output projection.
    o3 = jnp.einsum("bic,bcd->bid", attn3, v_big,
                    preferred_element_type=jnp.float32)  # (Bt, P, Dp) f32

    # Single lane-dense 128->128 output projection (padded rows/cols of w_out are
    # zero) followed by a lane-dense (multiple-of-128) store.
    y = jnp.dot(o3.reshape(R, Dp).astype(mm_dtype), wout_ref[...],
                preferred_element_type=jnp.float32) + bout_ref[...]
    o_ref[...] = y.reshape(Bt, P, Dp).astype(o_ref.dtype)


def attention_forward(x, w_qkv, b_qkv, w_out, b_out, *, num_heads=8, fwd_heads=12,
                      batch_block=None, matmul_dtype=jnp.bfloat16):
    """ViT Attention forward.  x: (B, P, D); weights in (in, out) layout.

    matmul_dtype: dtype of the MXU inputs (default bf16 -- the MXU is bf16-native
    on v5e/v6e/v7x); softmax math and all accumulation stay f32.  Pass
    jnp.float32 for full-precision matmuls.
    """
    B, P, D = x.shape
    assert D % fwd_heads == 0, "forward hardcodes the h=12 head split"
    S = D // fwd_heads
    # Faithful to the PyTorch module: scale uses num_heads=8 (head_dim = D // 8)
    # even though the forward splits h=12 heads of size D // 12.  Do not "fix".
    scale = float(D // num_heads) ** (-0.5)

    mm_dtype = jnp.dtype(matmul_dtype)
    f32 = jnp.float32

    # Lane-dense padded feature width (multiple of 128).  Padded columns are zero
    # and act as "phantom heads" whose v is zero, so they contribute nothing.
    Dp = ((D + 127) // 128) * 128
    assert Dp % S == 0, "padded lane width must hold a whole number of heads"
    HP = Dp // S
    GP = HP * P

    # ---------- wrapper-side weight prep (free layout plumbing, once per call) ----------
    w_qkv = jnp.asarray(w_qkv)
    w_out_a = jnp.asarray(w_out)
    b_qkv = jnp.asarray(b_qkv).reshape(-1)
    b_out_a = jnp.asarray(b_out).reshape(-1)

    # torch.split order on the 'c' axis of '(c h s)': chunk 0 = v, 1 = q, 2 = k.
    w_v, w_q, w_k = w_qkv[:, :D], w_qkv[:, D:2 * D], w_qkv[:, 2 * D:]
    b_v, b_q, b_k = b_qkv[:D], b_qkv[D:2 * D], b_qkv[2 * D:]
    # Fold the softmax scale into the q projection (weight-sized multiply once per
    # call instead of a per-row VPU pass per grid step).
    w_q = w_q * scale
    b_q = b_q * scale

    pad_c = Dp - D

    def pad_w(w):           # (D, D) -> (D, Dp)
        return jnp.pad(w, ((0, 0), (0, pad_c)))

    def pad_b(b):           # (D,) -> (Dp,)
        return jnp.pad(b, (0, pad_c))

    w_qkv_p = jnp.concatenate([pad_w(w_v), pad_w(w_q), pad_w(w_k)],
                              axis=1).astype(mm_dtype)                       # (D, 3*Dp)
    b_qkv_p = jnp.concatenate([pad_b(b_v), pad_b(b_q), pad_b(b_k)]
                              ).reshape(1, 3 * Dp).astype(f32)               # (1, 3*Dp)
    w_out_p = jnp.pad(w_out_a, ((0, pad_c), (0, pad_c))).astype(mm_dtype)    # (Dp, Dp)
    b_out_p = pad_b(b_out_a).reshape(1, Dp).astype(f32)                      # (1, Dp)

    # Block-diagonal head selector: hmask[h*P + j, d] = 1 iff d // S == h.
    col_head = jnp.arange(Dp) // S
    row_head = jnp.arange(GP) // P
    hmask = (row_head[:, None] == col_head[None, :]).astype(mm_dtype)        # (GP, Dp)
    # Group-sum matrix for the per-head softmax denominator (f32 for exact sums).
    grp = jnp.arange(GP) // P
    gsum = (grp[:, None] == grp[None, :]).astype(f32)                        # (GP, GP)

    # ---------- batch-block (grid) selection ----------
    if batch_block is None:
        # Target ~512 token rows per grid step: enough work to amortize the
        # ~0.35us fixed per-step pipeline overhead, while the HP-fold
        # block-diagonal expansion (k_big/v_big) stays a few MB of VMEM
        # (well under the 32 MiB default scoped limit, incl. v7x's 64 MiB total).
        bt = max(1, min(B, 512 // max(P, 1)))
    else:
        bt = max(1, min(int(batch_block), B))
    # v7x megacore: keep at least 2 grid steps so the "parallel" grid axis can
    # shard across both TensorCores (harmless on single-TC v5e/v6e).
    if B >= 2:
        bt = min(bt, B // 2)
    bt = max(bt, 1)
    while B % bt:
        bt -= 1

    kernel = functools.partial(_attention_kernel, Bt=bt, P=P, D=D, Dp=Dp, HP=HP,
                               mm_dtype=mm_dtype)

    full2 = lambda b: (0, 0)

    out_p = pl.pallas_call(
        kernel,
        out_shape=jax.ShapeDtypeStruct((B, P, Dp), x.dtype),
        grid_spec=pltpu.PrefetchScalarGridSpec(
            num_scalar_prefetch=0,
            grid=(B // bt,),
            in_specs=[
                pl.BlockSpec((bt, P, D), lambda b: (b, 0, 0)),   # x block
                pl.BlockSpec((D, 3 * Dp), full2),                # fused/padded QKV weight
                pl.BlockSpec((1, 3 * Dp), full2),                # fused/padded QKV bias
                pl.BlockSpec((Dp, Dp), full2),                   # padded output weight
                pl.BlockSpec((1, Dp), full2),                    # padded output bias
                pl.BlockSpec((GP, Dp), full2),                   # head-selector mask
                pl.BlockSpec((GP, GP), full2),                   # softmax group-sum matrix
            ],
            out_specs=pl.BlockSpec((bt, P, Dp), lambda b: (b, 0, 0)),
        ),
        compiler_params=pltpu.CompilerParams(dimension_semantics=("parallel",)),
    )(x, w_qkv_p, b_qkv_p, w_out_p, b_out_p, hmask, gsum)

    # Strip the lane padding outside the kernel (keep it if the next layer can
    # consume the padded width directly).
    return out_p[:, :, :D]


def _reference(x, w_qkv, b_qkv, w_out, b_out, *, num_heads=8, fwd_heads=12):
    """Pure-JAX mirror of the PyTorch forward, for a correctness check."""
    B, P, D = x.shape
    S = D // fwd_heads
    scale = float(D // num_heads) ** (-0.5)
    hi = jax.lax.Precision.HIGHEST
    qkv = jnp.dot(x, w_qkv, precision=hi) + b_qkv       # (B, P, 3D)
    qkv = qkv.reshape(B, P, 3, fwd_heads, S)             # (b, p, c, h, s)
    v = jnp.transpose(qkv[:, :, 0], (0, 2, 1, 3))        # (B, H, P, S)
    q = jnp.transpose(qkv[:, :, 1], (0, 2, 1, 3))
    k = jnp.transpose(qkv[:, :, 2], (0, 2, 1, 3))
    attn = jnp.einsum("bhps,bhks->bhpk", q, k, precision=hi) * scale
    attn = jax.nn.softmax(attn, axis=-1)
    out = jnp.einsum("bhpk,bhks->bhps", attn, v, precision=hi)
    out = jnp.transpose(out, (0, 2, 1, 3)).reshape(B, P, D)
    return jnp.dot(out, w_out, precision=hi) + b_out


if __name__ == "__main__":
    # Small shapes consistent with the module: D divisible by 12 (h=12 split) and
    # by 8 (num_heads used only for the scale).
    B, P, D = 4, 16, 96

    key = jax.random.PRNGKey(0)
    k1, k2, k3, k4, k5 = jax.random.split(key, 5)

    x = jax.random.normal(k1, (B, P, D), dtype=jnp.float32)

    # nn.Linear-style init: U(-1/sqrt(fan_in), 1/sqrt(fan_in)); stored as (in, out).
    lim = 1.0 / (D ** 0.5)
    w_qkv = jax.random.uniform(k2, (D, 3 * D), jnp.float32, -lim, lim)
    b_qkv = jax.random.uniform(k3, (3 * D,), jnp.float32, -lim, lim)
    w_out = jax.random.uniform(k4, (D, D), jnp.float32, -lim, lim)
    b_out = jax.random.uniform(k5, (D,), jnp.float32, -lim, lim)

    y_ref = _reference(x, w_qkv, b_qkv, w_out, b_out)

    # f32 MXU-input path (errors limited to the approximate softmax reciprocal).
    y32 = attention_forward(x, w_qkv, b_qkv, w_out, b_out, matmul_dtype=jnp.float32)
    y32 = jax.block_until_ready(y32)
    assert y32.shape == (B, P, D)
    assert jnp.allclose(y32, y_ref, atol=3e-3, rtol=3e-3), "f32 path mismatch vs JAX reference"

    # Default bf16 MXU-input path (recommended on v5e/v6e/v7x); softmax and
    # accumulation stay f32.
    y16 = attention_forward(x, w_qkv, b_qkv, w_out, b_out)
    y16 = jax.block_until_ready(y16)
    assert y16.shape == (B, P, D)
    assert jnp.allclose(y16, y_ref, atol=4e-2, rtol=4e-2), "bf16 path mismatch vs JAX reference"

    # TODO(synk): attn_drop / out_drop have p=0.0 (module defaults) -> identity; no RNG path needed.
    print("KERNEL_OK")
</pallas_src>

<mosaic_0001>
module attributes {stable_mosaic.version = 11 : i64} {
  func.func @_attention_kernel(%arg0: i32, %arg1: memref<2x16x96xf32, #tpu.memory_space<vmem>>, %arg2: memref<96x384xf32, #tpu.memory_space<vmem>>, %arg3: memref<1x384xf32, #tpu.memory_space<vmem>>, %arg4: memref<128x128xf32, #tpu.memory_space<vmem>>, %arg5: memref<1x128xf32, #tpu.memory_space<vmem>>, %arg6: memref<256x128xf32, #tpu.memory_space<vmem>>, %arg7: memref<256x256xf32, #tpu.memory_space<vmem>>, %arg8: memref<2x16x128xf32, #tpu.memory_space<vmem>>) attributes {dimension_semantics = [#tpu.dimension_semantics<parallel>], iteration_bounds = array<i64: 2>, scalar_prefetch = 0 : i64, scratch_operands = 0 : i64, tpu.core_type = #tpu.core_type<tc>, window_params = [{transform_indices = @transform_0, window_bounds = array<i64: 2, 16, 96>}, {pipeline_mode = #tpu.pipeline_mode<synchronous>, transform_indices = @transform_1, window_bounds = array<i64: 96, 384>}, {pipeline_mode = #tpu.pipeline_mode<synchronous>, transform_indices = @transform_2, window_bounds = array<i64: 1, 384>}, {pipeline_mode = #tpu.pipeline_mode<synchronous>, transform_indices = @transform_3, window_bounds = array<i64: 128, 128>}, {pipeline_mode = #tpu.pipeline_mode<synchronous>, transform_indices = @transform_4, window_bounds = array<i64: 1, 128>}, {pipeline_mode = #tpu.pipeline_mode<synchronous>, transform_indices = @transform_5, window_bounds = array<i64: 256, 128>}, {pipeline_mode = #tpu.pipeline_mode<synchronous>, transform_indices = @transform_6, window_bounds = array<i64: 256, 256>}, {transform_indices = @transform_7, window_bounds = array<i64: 2, 16, 128>}]} {
    %c0 = arith.constant 0 : index
    %c0_0 = arith.constant 0 : index
    %c0_1 = arith.constant 0 : index
    %0 = vector.load %arg1[%c0, %c0_0, %c0_1] : memref<2x16x96xf32, #tpu.memory_space<vmem>>, vector<2x16x96xf32>
    %1 = vector.shape_cast %0 : vector<2x16x96xf32> to vector<32x96xf32>
    %c0_2 = arith.constant 0 : index
    %c0_3 = arith.constant 0 : index
    %2 = vector.load %arg2[%c0_2, %c0_3] : memref<96x384xf32, #tpu.memory_space<vmem>>, vector<96x384xf32>
    %cst = arith.constant dense<0.000000e+00> : vector<32x384xf32>
    %3 = tpu.matmul %1, %2, %cst {dimension_numbers = #tpu.dot_dimension_numbers<[1], [0], [0], [1], [0, 0, 1, 1], [], []>} : vector<32x96xf32>, vector<96x384xf32>, vector<32x384xf32> -> vector<32x384xf32>
    %c0_4 = arith.constant 0 : index
    %c0_5 = arith.constant 0 : index
    %4 = vector.load %arg3[%c0_4, %c0_5] : memref<1x384xf32, #tpu.memory_space<vmem>>, vector<1x384xf32>
    %5 = vector.broadcast %4 : vector<1x384xf32> to vector<32x384xf32>
    %6 = arith.addf %3, %5 : vector<32x384xf32>
    %7 = vector.extract_strided_slice %6 {offsets = [0, 0], sizes = [32, 128], strides = [1, 1]} : vector<32x384xf32> to vector<32x128xf32>
    %8 = vector.shape_cast %7 : vector<32x128xf32> to vector<2x16x128xf32>
    %9 = vector.extract_strided_slice %6 {offsets = [0, 128], sizes = [32, 128], strides = [1, 1]} : vector<32x384xf32> to vector<32x128xf32>
    %10 = vector.shape_cast %9 : vector<32x128xf32> to vector<2x16x128xf32>
    %11 = vector.extract_strided_slice %6 {offsets = [0, 256], sizes = [32, 128], strides = [1, 1]} : vector<32x384xf32> to vector<32x128xf32>
    %12 = vector.shape_cast %11 : vector<32x128xf32> to vector<2x16x128xf32>
    %c0_6 = arith.constant 0 : index
    %c0_7 = arith.constant 0 : index
    %13 = vector.load %arg6[%c0_6, %c0_7] : memref<256x128xf32, #tpu.memory_space<vmem>>, vector<256x128xf32>
    %14 = tpu.concatenate %12, %12, %12, %12, %12, %12, %12, %12, %12, %12, %12, %12, %12, %12, %12, %12 in 1 : vector<2x16x128xf32>, vector<2x16x128xf32>, vector<2x16x128xf32>, vector<2x16x128xf32>, vector<2x16x128xf32>, vector<2x16x128xf32>, vector<2x16x128xf32>, vector<2x16x128xf32>, vector<2x16x128xf32>, vector<2x16x128xf32>, vector<2x16x128xf32>, vector<2x16x128xf32>, vector<2x16x128xf32>, vector<2x16x128xf32>, vector<2x16x128xf32>, vector<2x16x128xf32> -> vector<2x256x128xf32>
    %15 = vector.shape_cast %13 : vector<256x128xf32> to vector<1x256x128xf32>
    %16 = vector.broadcast %15 : vector<1x256x128xf32> to vector<2x256x128xf32>
    %17 = arith.mulf %14, %16 : vector<2x256x128xf32>
    %18 = tpu.concatenate %8, %8, %8, %8, %8, %8, %8, %8, %8, %8, %8, %8, %8, %8, %8, %8 in 1 : vector<2x16x128xf32>, vector<2x16x128xf32>, vector<2x16x128xf32>, vector<2x16x128xf32>, vector<2x16x128xf32>, vector<2x16x128xf32>, vector<2x16x128xf32>, vector<2x16x128xf32>, vector<2x16x128xf32>, vector<2x16x128xf32>, vector<2x16x128xf32>, vector<2x16x128xf32>, vector<2x16x128xf32>, vector<2x16x128xf32>, vector<2x16x128xf32>, vector<2x16x128xf32> -> vector<2x256x128xf32>
    %19 = vector.shape_cast %13 : vector<256x128xf32> to vector<1x256x128xf32>
    %20 = vector.broadcast %19 : vector<1x256x128xf32> to vector<2x256x128xf32>
    %21 = arith.mulf %18, %20 : vector<2x256x128xf32>
    "tpu.trace_start"() <{level = 10 : i32, message = "bid,bcd->bic"}> : () -> ()
    %cst_8 = arith.constant dense<0.000000e+00> : vector<2x16x256xf32>
    %22 = tpu.matmul %10, %17, %cst_8 {dimension_numbers = #tpu.dot_dimension_numbers<[2], [2], [1], [1], [0, 0, 0, 1, 1, 1], [0], [0]>} : vector<2x16x128xf32>, vector<2x256x128xf32>, vector<2x16x256xf32> -> vector<2x16x256xf32>
    "tpu.trace_stop"() : () -> ()
    %23 = vector.shape_cast %22 : vector<2x16x256xf32> to vector<32x256xf32>
    %cst_9 = arith.constant dense<0xFF800000> : vector<32xf32>
    %24 = vector.multi_reduction <maximumf>, %23, %cst_9 [1] : vector<32x256xf32> to vector<32xf32>
    %25 = vector.shape_cast %24 : vector<32xf32> to vector<32x1xf32>
    %26 = vector.broadcast %25 : vector<32x1xf32> to vector<32x256xf32>
    %27 = arith.subf %23, %26 : vector<32x256xf32>
    %28 = math.exp %27 : vector<32x256xf32>
    %c0_10 = arith.constant 0 : index
    %c0_11 = arith.constant 0 : index
    %29 = vector.load %arg7[%c0_10, %c0_11] : memref<256x256xf32, #tpu.memory_space<vmem>>, vector<256x256xf32>
    %cst_12 = arith.constant dense<0.000000e+00> : vector<32x256xf32>
    %30 = tpu.matmul %28, %29, %cst_12 {dimension_numbers = #tpu.dot_dimension_numbers<[1], [0], [0], [1], [0, 0, 1, 1], [], []>} : vector<32x256xf32>, vector<256x256xf32>, vector<32x256xf32> -> vector<32x256xf32>
    %cst_13 = arith.constant 1.000000e-30 : f32
    %31 = vector.broadcast %cst_13 : f32 to vector<32x256xf32>
    %32 = arith.maximumf %30, %31 : vector<32x256xf32>
    %33 = tpu.reciprocal %32 {approx = true} : vector<32x256xf32> -> vector<32x256xf32>
    %34 = arith.mulf %28, %33 : vector<32x256xf32>
    %35 = vector.shape_cast %34 : vector<32x256xf32> to vector<2x16x256xf32>
    "tpu.trace_start"() <{level = 10 : i32, message = "bic,bcd->bid"}> : () -> ()
    %cst_14 = arith.constant dense<0.000000e+00> : vector<2x16x128xf32>
    %36 = tpu.matmul %35, %21, %cst_14 {dimension_numbers = #tpu.dot_dimension_numbers<[2], [1], [1], [2], [0, 0, 0, 1, 1, 2], [0], [0]>} : vector<2x16x256xf32>, vector<2x256x128xf32>, vector<2x16x128xf32> -> vector<2x16x128xf32>
    "tpu.trace_stop"() : () -> ()
    %37 = vector.shape_cast %36 : vector<2x16x128xf32> to vector<32x128xf32>
    %c0_15 = arith.constant 0 : index
    %c0_16 = arith.constant 0 : index
    %38 = vector.load %arg4[%c0_15, %c0_16] : memref<128x128xf32, #tpu.memory_space<vmem>>, vector<128x128xf32>
    %cst_17 = arith.constant dense<0.000000e+00> : vector<32x128xf32>
    %39 = tpu.matmul %37, %38, %cst_17 {dimension_numbers = #tpu.dot_dimension_numbers<[1], [0], [0], [1], [0, 0, 1, 1], [], []>} : vector<32x128xf32>, vector<128x128xf32>, vector<32x128xf32> -> vector<32x128xf32>
    %c0_18 = arith.constant 0 : index
    %c0_19 = arith.constant 0 : index
    %40 = vector.load %arg5[%c0_18, %c0_19] : memref<1x128xf32, #tpu.memory_space<vmem>>, vector<1x128xf32>
    %41 = vector.broadcast %40 : vector<1x128xf32> to vector<32x128xf32>
    %42 = arith.addf %39, %41 : vector<32x128xf32>
    %43 = vector.shape_cast %42 : vector<32x128xf32> to vector<2x16x128xf32>
    %c0_20 = arith.constant 0 : index
    %c0_21 = arith.constant 0 : index
    %c0_22 = arith.constant 0 : index
    %44 = vector.load %arg8[%c0_20, %c0_21, %c0_22] : memref<2x16x128xf32, #tpu.memory_space<vmem>>, vector<2x16x128xf32>
    tpu.vector_store %arg8[%c0_20, %c0_21, %c0_22], %43 {strides = array<i32>} : memref<2x16x128xf32, #tpu.memory_space<vmem>>, vector<2x16x128xf32>,
    return
  }
  func.func @transform_0(%arg0: i32) -> (i32, i32, i32) {
    %c0_i32 = arith.constant 0 : i32
    %c0_i32_0 = arith.constant 0 : i32
    %c0_i32_1 = arith.constant 0 : i32
    return %arg0, %c0_i32, %c0_i32_0 : i32, i32, i32
  }
  func.func @transform_1(%arg0: i32) -> (i32, i32) {
    %c0_i32 = arith.constant 0 : i32
    %c0_i32_0 = arith.constant 0 : i32
    %c0_i32_1 = arith.constant 0 : i32
    return %c0_i32, %c0_i32_0 : i32, i32
  }
  func.func @transform_2(%arg0: i32) -> (i32, i32) {
    %c0_i32 = arith.constant 0 : i32
    %c0_i32_0 = arith.constant 0 : i32
    %c0_i32_1 = arith.constant 0 : i32
    return %c0_i32, %c0_i32_0 : i32, i32
  }
  func.func @transform_3(%arg0: i32) -> (i32, i32) {
    %c0_i32 = arith.constant 0 : i32
    %c0_i32_0 = arith.constant 0 : i32
    %c0_i32_1 = arith.constant 0 : i32
    return %c0_i32, %c0_i32_0 : i32, i32
  }
  func.func @transform_4(%arg0: i32) -> (i32, i32) {
    %c0_i32 = arith.constant 0 : i32
    %c0_i32_0 = arith.constant 0 : i32
    %c0_i32_1 = arith.constant 0 : i32
    return %c0_i32, %c0_i32_0 : i32, i32
  }
  func.func @transform_5(%arg0: i32) -> (i32, i32) {
    %c0_i32 = arith.constant 0 : i32
    %c0_i32_0 = arith.constant 0 : i32
    %c0_i32_1 = arith.constant 0 : i32
    return %c0_i32, %c0_i32_0 : i32, i32
  }
  func.func @transform_6(%arg0: i32) -> (i32, i32) {
    %c0_i32 = arith.constant 0 : i32
    %c0_i32_0 = arith.constant 0 : i32
    %c0_i32_1 = arith.constant 0 : i32
    return %c0_i32, %c0_i32_0 : i32, i32
  }
  func.func @transform_7(%arg0: i32) -> (i32, i32, i32) {
    %c0_i32 = arith.constant 0 : i32
    %c0_i32_0 = arith.constant 0 : i32
    %c0_i32_1 = arith.constant 0 : i32
    return %arg0, %c0_i32, %c0_i32_0 : i32, i32, i32
  }
}

</mosaic_0001>

<llo_original>
// kernel: tpu_custom_call.1
$region0: #{tpu_custom_call.1}
  #allocation0 [shape = 'u32[]', space=smem, size = 0x4, offset = 0x4, fixed_abs, tag = 'smem constant byte address 0x4 - core index']
  #allocation1 [shape = 'u32[144,128]{1,0:T(1,128)}', space=vmem, size = 0x12000, scoped, tag = 'internal scratch']
  %s0 = inlined_call_operand.hbm [shape: f32[4,16,96], index: 0, kind: input, shape index: {}]
  %s1 = inlined_call_operand.hbm [shape: f32[96,384], index: 1, kind: input, shape index: {}]
  %s2 = inlined_call_operand.vmem [shape: f32[1,384], index: 2, kind: input, shape index: {}]
  %s3 = inlined_call_operand.hbm [shape: f32[128,128], index: 3, kind: input, shape index: {}]
  %s4 = inlined_call_operand.vmem [shape: f32[1,128], index: 4, kind: input, shape index: {}]
  %s5 = inlined_call_operand.hbm [shape: f32[256,128], index: 5, kind: input, shape index: {}]
  %s6 = inlined_call_operand.hbm [shape: f32[256,256], index: 6, kind: input, shape index: {}]
  %s7 = inlined_call_operand.hbm [shape: f32[4,16,128], index: 7, kind: output, shape index: {}]
  %s8 = sld [smem:[#allocation0]]
  $region81: #{tpu_custom_call.1} parent=0
    _
  %s10 = ssub.s32 1, %s8
  %s11 = scalar_select 0, %s10, %s8
  $region1: #{tpu_custom_call.1} parent=0
    #allocation2 [shape = 'u8[32768]{0}', space=vmem, size = 0x8000, scoped, tag = 'input window, operand 0']
    #allocation3 [shape = 's32[2]{0}', space=sflag, size = 0x8, scoped, tag = 'scoped memory for tpu_custom_call.1']
    #allocation4 [shape = 's32[2]{0}', space=sflag, size = 0x8, scoped, tag = 'scoped memory for tpu_custom_call.1']
    #allocation5 [shape = 'u8[147456]{0}', space=vmem, size = 0x24000, scoped, tag = 'input window, operand 1, single buffered']
    #allocation6 [shape = 's32[1]{0}', space=sflag, size = 0x4, scoped, tag = 'scoped memory for tpu_custom_call.1']
    #allocation7 [shape = 'u8[65536]{0}', space=vmem, size = 0x10000, scoped, tag = 'input window, operand 3, single buffered']
    #allocation8 [shape = 'u8[131072]{0}', space=vmem, size = 0x20000, scoped, tag = 'input window, operand 5, single buffered']
    #allocation9 [shape = 's32[1]{0}', space=sflag, size = 0x4, scoped, tag = 'scoped memory for tpu_custom_call.1']
    #allocation10 [shape = 'u8[262144]{0}', space=vmem, size = 0x40000, scoped, tag = 'input window, operand 6, single buffered']
    #allocation11 [shape = 'u8[32768]{0}', space=vmem, size = 0x8000, scoped, tag = 'output window, operand 0']
    %12 = vsyncpa [#allocation3], 0
    %s13 = scalar_lea.sflag [#allocation3], 1
    %14 = vsyncpa %s13, 0
    %15 = vsyncpa [#allocation6], 0
    %16 = vsyncpa [#allocation9], 0
    %17 = vsyncpa [#allocation4], 0
    %s18 = scalar_lea.sflag [#allocation4], 1
    %19 = vsyncpa %s18, 0
    loop: start=0, step=1, limit=4
    $region2: #{tpu_custom_call.1} parent=1 // loop_pre_header
      _
    $region3: #{tpu_custom_call.1} parent=1 // loop_header
      %s21 = sphi 0, %s25
      %p22 = scmp.ge.s32.totalorder %s21, 4
      %s31 = sphi 0, %s33
      %s34 = sphi 0, %s31
      %s35 = sphi 0, %s34
      %s51 = sphi 0, %s35
      %s55 = sphi 0, %s55
      %s57 = sphi 0, %s55
      %s58 = sphi 0, %s57
      %s72 = sphi 0, %s58
      %s76 = sphi 0, %s76
      %s78 = sphi 0, %s76
      %s79 = sphi 0, %s78
      %s93 = sphi 0, %s79
      %s97 = sphi 0, %s97
      %s99 = sphi 0, %s97
      %s100 = sphi 0, %s99
      %s114 = sphi 0, %s100
      %s118 = sphi 0, %s118
      %s120 = sphi 0, %s118
      %s121 = sphi 0, %s120
      %s135 = sphi 0, %s121
      %s139 = sphi 0, %s139
      %s141 = sphi 0, %s139
      %s142 = sphi 0, %s141
      %s156 = sphi 0, %s142
      %s160 = sphi 0, %s160
      %s162 = sphi 0, %s160
      %s163 = sphi 0, %s162
      %s177 = sphi 0, %s163
      %s183 = sphi 0, %s185
      %s186 = sphi 0, %s183
      %s187 = sphi 0, %s186
      %s203 = sphi 0, %s187
    $region4: #{tpu_custom_call.1} parent=1 // loop_header_branch
      %24 = sbr.rel (%p22) target = $region8
    $region5: #{tpu_custom_call.1} parent=1 // loop_body
      %s26 = ssub.s32 %s21, 1
      %s27 = ssub.s32 %s21, 2
      %s28 = sadd.s32 %s21, 1
      %s29 = ssub.s32 %s21, %s28
      %p30 = scmp.eq.s32.totalorder %s29, 0
      %s32 = sadd.s32 %s31, 1
      %s33 = scalar_select %p30, %s31, %s32
      %p36 = pneg %p30
      %p37 = scmp.eq.s32.totalorder %s21, 1
      %p38 = por %p36, %p37
      %p39 = scmp.ne.s32.totalorder %s31, %s34
      %p40 = scmp.eq.s32.totalorder %s21, 0
      %p41 = por %p39, %p40
      %p42 = scmp.ne.s32.totalorder %s31, %s34
      %p43 = scmp.eq.s32.totalorder %s26, 1
      %p44 = por %p42, %p43
      %p45 = scmp.ne.s32.totalorder %s34, %s35
      %p46 = scmp.eq.s32.totalorder %s26, 0
      %p47 = por %p45, %p46
      %p48 = scmp.ne.s32.totalorder %s34, %s35
      %p49 = scmp.eq.s32.totalorder %s27, 1
      %p50 = por %p48, %p49
      %p52 = scmp.ne.s32.totalorder %s35, %s51
      %p53 = scmp.eq.s32.totalorder %s27, 0
      %p54 = por %p52, %p53
      %s56 = sadd.s32 %s55, 1
      %p59 = scmp.eq.s32.totalorder %s21, 1
      %p60 = scmp.ne.s32.totalorder %s55, %s57
      %p61 = scmp.eq.s32.totalorder %s21, 0
      %p62 = por %p60, %p61
      %p63 = scmp.ne.s32.totalorder %s55, %s57
      %p64 = scmp.eq.s32.totalorder %s26, 1
      %p65 = por %p63, %p64
      %p66 = scmp.ne.s32.totalorder %s57, %s58
      %p67 = scmp.eq.s32.totalorder %s26, 0
      %p68 = por %p66, %p67
      %p69 = scmp.ne.s32.totalorder %s57, %s58
      %p70 = scmp.eq.s32.totalorder %s27, 1
      %p71 = por %p69, %p70
      %p73 = scmp.ne.s32.totalorder %s58, %s72
      %p74 = scmp.eq.s32.totalorder %s27, 0
      %p75 = por %p73, %p74
      %s77 = sadd.s32 %s76, 1
      %p80 = scmp.eq.s32.totalorder %s21, 1
      %p81 = scmp.ne.s32.totalorder %s76, %s78
      %p82 = scmp.eq.s32.totalorder %s21, 0
      %p83 = por %p81, %p82
      %p84 = scmp.ne.s32.totalorder %s76, %s78
      %p85 = scmp.eq.s32.totalorder %s26, 1
      %p86 = por %p84, %p85
      %p87 = scmp.ne.s32.totalorder %s78, %s79
      %p88 = scmp.eq.s32.totalorder %s26, 0
      %p89 = por %p87, %p88
      %p90 = scmp.ne.s32.totalorder %s78, %s79
      %p91 = scmp.eq.s32.totalorder %s27, 1
      %p92 = por %p90, %p91
      %p94 = scmp.ne.s32.totalorder %s79, %s93
      %p95 = scmp.eq.s32.totalorder %s27, 0
      %p96 = por %p94, %p95
      %s98 = sadd.s32 %s97, 1
      %p101 = scmp.eq.s32.totalorder %s21, 1
      %p102 = scmp.ne.s32.totalorder %s97, %s99
      %p103 = scmp.eq.s32.totalorder %s21, 0
      %p104 = por %p102, %p103
      %p105 = scmp.ne.s32.totalorder %s97, %s99
      %p106 = scmp.eq.s32.totalorder %s26, 1
      %p107 = por %p105, %p106
      %p108 = scmp.ne.s32.totalorder %s99, %s100
      %p109 = scmp.eq.s32.totalorder %s26, 0
      %p110 = por %p108, %p109
      %p111 = scmp.ne.s32.totalorder %s99, %s100
      %p112 = scmp.eq.s32.totalorder %s27, 1
      %p113 = por %p111, %p112
      %p115 = scmp.ne.s32.totalorder %s100, %s114
      %p116 = scmp.eq.s32.totalorder %s27, 0
      %p117 = por %p115, %p116
      %s119 = sadd.s32 %s118, 1
      %p122 = scmp.eq.s32.totalorder %s21, 1
      %p123 = scmp.ne.s32.totalorder %s118, %s120
      %p124 = scmp.eq.s32.totalorder %s21, 0
      %p125 = por %p123, %p124
      %p126 = scmp.ne.s32.totalorder %s118, %s120
      %p127 = scmp.eq.s32.totalorder %s26, 1
      %p128 = por %p126, %p127
      %p129 = scmp.ne.s32.totalorder %s120, %s121
      %p130 = scmp.eq.s32.totalorder %s26, 0
      %p131 = por %p129, %p130
      %p132 = scmp.ne.s32.totalorder %s120, %s121
      %p133 = scmp.eq.s32.totalorder %s27, 1
      %p134 = por %p132, %p133
      %p136 = scmp.ne.s32.totalorder %s121, %s135
      %p137 = scmp.eq.s32.totalorder %s27, 0
      %p138 = por %p136, %p137
      %s140 = sadd.s32 %s139, 1
      %p143 = scmp.eq.s32.totalorder %s21, 1
      %p144 = scmp.ne.s32.totalorder %s139, %s141
      %p145 = scmp.eq.s32.totalorder %s21, 0
      %p146 = por %p144, %p145
      %p147 = scmp.ne.s32.totalorder %s139, %s141
      %p148 = scmp.eq.s32.totalorder %s26, 1
      %p149 = por %p147, %p148
      %p150 = scmp.ne.s32.totalorder %s141, %s142
      %p151 = scmp.eq.s32.totalorder %s26, 0
      %p152 = por %p150, %p151
      %p153 = scmp.ne.s32.totalorder %s141, %s142
      %p154 = scmp.eq.s32.totalorder %s27, 1
      %p155 = por %p153, %p154
      %p157 = scmp.ne.s32.totalorder %s142, %s156
      %p158 = scmp.eq.s32.totalorder %s27, 0
      %p159 = por %p157, %p158
      %s161 = sadd.s32 %s160, 1
      %p164 = scmp.eq.s32.totalorder %s21, 1
      %p165 = scmp.ne.s32.totalorder %s160, %s162
      %p166 = scmp.eq.s32.totalorder %s21, 0
      %p167 = por %p165, %p166
      %p168 = scmp.ne.s32.totalorder %s160, %s162
      %p169 = scmp.eq.s32.totalorder %s26, 1
      %p170 = por %p168, %p169
      %p171 = scmp.ne.s32.totalorder %s162, %s163
      %p172 = scmp.eq.s32.totalorder %s26, 0
      %p173 = por %p171, %p172
      %p174 = scmp.ne.s32.totalorder %s162, %s163
      %p175 = scmp.eq.s32.totalorder %s27, 1
      %p176 = por %p174, %p175
      %p178 = scmp.ne.s32.totalorder %s163, %s177
      %p179 = scmp.eq.s32.totalorder %s27, 0
      %p180 = por %p178, %p179
      %s181 = ssub.s32 %s21, %s28
      %p182 = scmp.eq.s32.totalorder %s181, 0
      %s184 = sadd.s32 %s183, 1
      %s185 = scalar_select %p182, %s183, %s184
      %p188 = pneg %p182
      %p189 = scmp.eq.s32.totalorder %s21, 1
      %p190 = por %p188, %p189
      %p191 = scmp.ne.s32.totalorder %s183, %s186
      %p192 = scmp.eq.s32.totalorder %s21, 0
      %p193 = por %p191, %p192
      %p194 = scmp.ne.s32.totalorder %s183, %s186
      %p195 = scmp.eq.s32.totalorder %s26, 1
      %p196 = por %p194, %p195
      %p197 = scmp.ne.s32.totalorder %s186, %s187
      %p198 = scmp.eq.s32.totalorder %s26, 0
      %p199 = por %p197, %p198
      %p200 = scmp.ne.s32.totalorder %s186, %s187
      %p201 = scmp.eq.s32.totalorder %s27, 1
      %p202 = por %p200, %p201
      %p204 = scmp.ne.s32.totalorder %s187, %s203
      %p205 = scmp.eq.s32.totalorder %s27, 0
      %p206 = por %p204, %p205
      %p207 = scmp.le.s32.totalorder 1, %s21
      %p208 = scmp.lt.s32.totalorder %s21, 3
      %p209 = pnand %p207, %p208
      %p210 = pneg %p209
      // Predicated region
      $region9: #{tpu_custom_call.1} parent=5 // pred_check
        _
      $region10: #{tpu_custom_call.1} parent=5 // pred_check_branch
        %212 = sbr.rel (%p209) target = $region12
      $region11: #{tpu_custom_call.1} parent=5 // pred_region
        %s213 = ssub.s32 %s21, 1
        // Predicated region
        $region13: #{tpu_custom_call.1} parent=11 // pred_check
          %p214 = pneg %p68
        $region14: #{tpu_custom_call.1} parent=11 // pred_check_branch
          %216 = sbr.rel (%p214) target = $region16
        $region15: #{tpu_custom_call.1} parent=11 // pred_region
          %s218 = ssub.s32 4608, 4608
          %219 = vsyncadd [#allocation6], %s218
          %s220 = sshll.u32 [#allocation5], 4
          %s221 = int_to_ptr.vmem [resolvable:$true] %s220
          %226 = dma.hbm_to_vmem [thread:$0]  %s1, 4608, %s221, [#allocation6], 384, 384, 24
        $region16: #{tpu_custom_call.1} parent=11 // pred_fallthru
          _
        // Predicated region
        $region17: #{tpu_custom_call.1} parent=11 // pred_check
          %p227 = pneg %p89
        $region18: #{tpu_custom_call.1} parent=11 // pred_check_branch
          %229 = sbr.rel (%p227) target = $region20
        $region19: #{tpu_custom_call.1} parent=11 // pred_region
          _
        $region20: #{tpu_custom_call.1} parent=11 // pred_fallthru
          _
        // Predicated region
        $region21: #{tpu_custom_call.1} parent=11 // pred_check
          %p230 = pneg %p110
        $region22: #{tpu_custom_call.1} parent=11 // pred_check_branch
          %232 = sbr.rel (%p230) target = $region24
        $region23: #{tpu_custom_call.1} parent=11 // pred_region
          %s234 = ssub.s32 2048, 2048
          %235 = vsyncadd [#allocation6], %s234
          %s236 = sshll.u32 [#allocation7], 4
          %s237 = int_to_ptr.vmem [resolvable:$true] %s236
          %242 = dma.hbm_to_vmem [thread:$0]  %s3, 2048, %s237, [#allocation6], 128, 128, 8
        $region24: #{tpu_custom_call.1} parent=11 // pred_fallthru
          _
        // Predicated region
        $region25: #{tpu_custom_call.1} parent=11 // pred_check
          %p243 = pneg %p131
        $region26: #{tpu_custom_call.1} parent=11 // pred_check_branch
          %245 = sbr.rel (%p243) target = $region28
        $region27: #{tpu_custom_call.1} parent=11 // pred_region
          _
        $region28: #{tpu_custom_call.1} parent=11 // pred_fallthru
          _
        // Predicated region
        $region29: #{tpu_custom_call.1} parent=11 // pred_check
          %p246 = pneg %p152
        $region30: #{tpu_custom_call.1} parent=11 // pred_check_branch
          %248 = sbr.rel (%p246) target = $region32
        $region31: #{tpu_custom_call.1} parent=11 // pred_region
          %s250 = ssub.s32 4096, 4096
          %251 = vsyncadd [#allocation9], %s250
          %s252 = sshll.u32 [#allocation8], 4
          %s253 = int_to_ptr.vmem [resolvable:$true] %s252
          %258 = dma.hbm_to_vmem [thread:$0]  %s5, 4096, %s253, [#allocation9], 128, 128, 8
        $region32: #{tpu_custom_call.1} parent=11 // pred_fallthru
          _
        // Predicated region
        $region33: #{tpu_custom_call.1} parent=11 // pred_check
          %p259 = pneg %p173
        $region34: #{tpu_custom_call.1} parent=11 // pred_check_branch
          %261 = sbr.rel (%p259) target = $region36
        $region35: #{tpu_custom_call.1} parent=11 // pred_region
          %s263 = ssub.s32 8192, 8192
          %264 = vsyncadd [#allocation9], %s263
          %s265 = sshll.u32 [#allocation10], 4
          %s266 = int_to_ptr.vmem [resolvable:$true] %s265
          %271 = dma.hbm_to_vmem [thread:$0]  %s6, 8192, %s266, [#allocation9], 256, 256, 16
        $region36: #{tpu_custom_call.1} parent=11 // pred_fallthru
          _
      $region12: #{tpu_custom_call.1} parent=5 // pred_fallthru
        _
      %p272 = scmp.lt.s32.totalorder %s21, 2
      // Predicated region
      $region37: #{tpu_custom_call.1} parent=5 // pred_check
        %p273 = pneg %p272
      $region38: #{tpu_custom_call.1} parent=5 // pred_check_branch
        %275 = sbr.rel (%p273) target = $region40
      $region39: #{tpu_custom_call.1} parent=5 // pred_region
        // Predicated region
        $region41: #{tpu_custom_call.1} parent=39 // pred_check
          %p276 = pneg %p41
        $region42: #{tpu_custom_call.1} parent=39 // pred_check_branch
          %278 = sbr.rel (%p276) target = $region44
        $region43: #{tpu_custom_call.1} parent=39 // pred_region
          %s279 = sand.u32 %s31, 1
          %s280 = scalar_lea.sflag [#allocation3], %s279
          %s281 = sand.u32 %s31, 1
          %s282 = smul.addr %s281, 32
          %s283 = scalar_lea.vmem [#allocation2], %s282
          %s284 = smul.u32 2, %s21
          %s286 = ssub.s32 512, 512
          %287 = vsyncadd %s280, %s286
          %s288 = smul.addr %s284, 2
          %s289 = smul.addr %s288, 128
          %s290 = scalar_lea.hbm %s0, %s289
          %s291 = sshll.u32 %s283, 4
          %s292 = int_to_ptr.vmem [resolvable:$true] %s291
          %297 = dma.hbm_to_vmem [thread:$0]  %s290, 512, %s292, %s280, 128, 128, 8
        $region44: #{tpu_custom_call.1} parent=39 // pred_fallthru
          _
      $region40: #{tpu_custom_call.1} parent=5 // pred_fallthru
        _
      %p298 = scmp.le.s32.totalorder 1, %s21
      %p299 = scmp.lt.s32.totalorder %s21, 3
      %p300 = pnand %p298, %p299
      %p301 = pneg %p300
      // Predicated region
      $region45: #{tpu_custom_call.1} parent=5 // pred_check
        _
      $region46: #{tpu_custom_call.1} parent=5 // pred_check_branch
        %303 = sbr.rel (%p300) target = $region48
      $region47: #{tpu_custom_call.1} parent=5 // pred_region
        %s304 = ssub.s32 %s21, 1
        %s305 = sand.u32 %s34, 1
        %s306 = scalar_lea.sflag [#allocation3], %s305
        %s307 = sand.u32 %s34, 1
        %s308 = smul.addr %s307, 32
        %s309 = scalar_lea.vmem [#allocation2], %s308
        // Predicated region
        $region49: #{tpu_custom_call.1} parent=47 // pred_check
          %p310 = pneg %p47
        $region50: #{tpu_custom_call.1} parent=47 // pred_check_branch
          %312 = sbr.rel (%p310) target = $region52
        $region51: #{tpu_custom_call.1} parent=47 // pred_region
          %313 = dma.done %s306, 512
        $region52: #{tpu_custom_call.1} parent=47 // pred_fallthru
          _
        // Predicated region
        $region53: #{tpu_custom_call.1} parent=47 // pred_check
          %p314 = pneg %p68
        $region54: #{tpu_custom_call.1} parent=47 // pred_check_branch
          %316 = sbr.rel (%p314) target = $region56
        $region55: #{tpu_custom_call.1} parent=47 // pred_region
          %317 = dma.done [#allocation6], 4608
        $region56: #{tpu_custom_call.1} parent=47 // pred_fallthru
          _
        // Predicated region
        $region57: #{tpu_custom_call.1} parent=47 // pred_check
          %p318 = pneg %p110
        $region58: #{tpu_custom_call.1} parent=47 // pred_check_branch
          %320 = sbr.rel (%p318) target = $region60
        $region59: #{tpu_custom_call.1} parent=47 // pred_region
          %321 = dma.done [#allocation6], 2048
        $region60: #{tpu_custom_call.1} parent=47 // pred_fallthru
          _
        // Predicated region
        $region61: #{tpu_custom_call.1} parent=47 // pred_check
          %p322 = pneg %p152
        $region62: #{tpu_custom_call.1} parent=47 // pred_check_branch
          %324 = sbr.rel (%p322) target = $region64
        $region63: #{tpu_custom_call.1} parent=47 // pred_region
          %325 = dma.done [#allocation9], 4096
        $region64: #{tpu_custom_call.1} parent=47 // pred_fallthru
          _
        // Predicated region
        $region65: #{tpu_custom_call.1} parent=47 // pred_check
          %p326 = pneg %p173
        $region66: #{tpu_custom_call.1} parent=47 // pred_check_branch
          %328 = sbr.rel (%p326) target = $region68
        $region67: #{tpu_custom_call.1} parent=47 // pred_region
          %329 = dma.done [#allocation9], 8192
        $region68: #{tpu_custom_call.1} parent=47 // pred_fallthru
          _
        %s330 = sand.u32 %s34, 1
        %s331 = scalar_lea.sflag [#allocation3], %s330
        %s332 = sand.u32 %s34, 1
        %s333 = smul.addr %s332, 32
        %s334 = scalar_lea.vmem [#allocation2], %s333
        %p335 = pneg %p47
        %p336 = pneg %p44
        %p337 = pneg %p68
        %p338 = pneg %p65
        %p339 = pneg %p89
        %p340 = pneg %p86
        %p341 = pneg %p110
        %p342 = pneg %p107
        %p343 = pneg %p131
        %p344 = pneg %p128
        %p345 = pneg %p152
        %p346 = pneg %p149
        %p347 = pneg %p173
        %p348 = pneg %p170
        %p349 = pneg %p199
        %p350 = pneg %p196
        %s351 = sand.u32 %s186, 1
        %s352 = scalar_lea.sflag [#allocation4], %s351
        %s353 = sand.u32 %s186, 1
        %s354 = smul.addr %s353, 32
        %s355 = scalar_lea.vmem [#allocation11], %s354
        %s356 = smul.u32 2, %s26
        %s357 = smul.u32 2, %s26
        %v358 = vld [vmem:[%s309] sm:$0xff]
        %v359 = vld [vmem:[%s309 + $0x8] sm:$0xff]
        %v360 = vld [vmem:[%s309 + $0x10] sm:$0xff]
        %v361 = vld [vmem:[%s309 + $0x18] sm:$0xff]
        %v362 = vld [vmem:[#allocation5] sm:$0xff]
        %v363 = vld [vmem:[#allocation5 + $0x8] sm:$0xff]
        %v364 = vld [vmem:[#allocation5 + $0x10] sm:$0xff]
        %v365 = vld [vmem:[#allocation5 + $0x18] sm:$0xff]
        %v366 = vld [vmem:[#allocation5 + $0x20] sm:$0xff]
        %v367 = vld [vmem:[#allocation5 + $0x28] sm:$0xff]
        %v368 = vld [vmem:[#allocation5 + $0x30] sm:$0xff]
        %v369 = vld [vmem:[#allocation5 + $0x38] sm:$0xff]
        %v370 = vld [vmem:[#allocation5 + $0x40] sm:$0xff]
        %v371 = vld [vmem:[#allocation5 + $0x48] sm:$0xff]
        %v372 = vld [vmem:[#allocation5 + $0x50] sm:$0xff]
        %v373 = vld [vmem:[#allocation5 + $0x58] sm:$0xff]
        %v374 = vld [vmem:[#allocation5 + $0x60] sm:$0xff]
        %v375 = vld [vmem:[#allocation5 + $0x68] sm:$0xff]
        %v376 = vld [vmem:[#allocation5 + $0x70] sm:$0xff]
        %v377 = vld [vmem:[#allocation5 + $0x78] sm:$0xff]
        %v378 = vld [vmem:[#allocation5 + $0x80] sm:$0xff]
        %v379 = vld [vmem:[#allocation5 + $0x88] sm:$0xff]
        %v380 = vld [vmem:[#allocation5 + $0x90] sm:$0xff]
        %v381 = vld [vmem:[#allocation5 + $0x98] sm:$0xff]
        %v382 = vld [vmem:[#allocation5 + $0xa0] sm:$0xff]
        %v383 = vld [vmem:[#allocation5 + $0xa8] sm:$0xff]
        %v384 = vld [vmem:[#allocation5 + $0xb0] sm:$0xff]
        %v385 = vld [vmem:[#allocation5 + $0xb8] sm:$0xff]
        %v386 = vld [vmem:[#allocation5 + $0xc0] sm:$0xff]
        %v387 = vld [vmem:[#allocation5 + $0xc8] sm:$0xff]
        %v388 = vld [vmem:[#allocation5 + $0xd0] sm:$0xff]
        %v389 = vld [vmem:[#allocation5 + $0xd8] sm:$0xff]
        %v390 = vld [vmem:[#allocation5 + $0xe0] sm:$0xff]
        %v391 = vld [vmem:[#allocation5 + $0xe8] sm:$0xff]
        %v392 = vld [vmem:[#allocation5 + $0xf0] sm:$0xff]
        %v393 = vld [vmem:[#allocation5 + $0xf8] sm:$0xff]
        %v394 = vld [vmem:[#allocation5 + $0x100] sm:$0xff]
        %v395 = vld [vmem:[#allocation5 + $0x108] sm:$0xff]
        %v396 = vld [vmem:[#allocation5 + $0x110] sm:$0xff]
        %v397 = vld [vmem:[#allocation5 + $0x118] sm:$0xff]
        %v398 = vld [vmem:[%s2] sm:$0x7]
        %v400 = vlaneseq
        %v401 = vshrl.u32 %v400, 7
        %v402 = vsub.s32 0, %v401
        %v403 = vrot.slane %v398, %v402
        %v404 = vlaneseq
        %v405 = vshrl.u32 %v404, 7
        %v406 = vsub.s32 1, %v405
        %v407 = vrot.slane %v398, %v406
        %v408 = vlaneseq
        %v409 = vshrl.u32 %v408, 7
        %v410 = vsub.s32 2, %v409
        %v411 = vrot.slane %v398, %v410
        %vm415 = vcmask 785408
        %v417 = vsel %vm415, %v358, 0
        %v420 = vsel %vm415, %v359, 0
        %v423 = vsel %vm415, %v360, 0
        %v426 = vsel %vm415, %v361, 0
        %428 = vmatprep.subr.mxu0 %v363
        %429 = vmatpush1.msra.mxu0 %v362
        %430 = vmatprep.subr.mxu0 %v366
        %431 = vmatpush1.msra.mxu0 %v365
        %432 = vmatprep.subr.mxu0 %v369
        %433 = vmatpush1.msra.mxu0 %v368
        %434 = vmatprep.subr.mxu0 %v372
        %435 = vmatpush1.msra.mxu0 %v371
        %436 = vmatprep.subr.mxu0 %v375
        %437 = vmatpush1.msra.mxu0 %v374
        %438 = vmatprep.subr.mxu0 %v378
        %439 = vmatpush1.msra.mxu0 %v377
        %440 = vmatprep.subr.mxu0 %v381
        %441 = vmatpush1.msra.mxu0 %v380
        %442 = vmatprep.subr.mxu0 %v384
        %443 = vmatpush1.msra.mxu0 %v383
        %444 = vmatprep.subr.mxu0 %v387
        %445 = vmatpush1.msra.mxu0 %v386
        %446 = vmatprep.subr.mxu0 %v390
        %447 = vmatpush1.msra.mxu0 %v389
        %448 = vmatprep.subr.mxu0 %v393
        %449 = vmatpush1.msra.mxu0 %v392
        %450 = vmatprep.subr.mxu0 %v396
        %451 = vmatpush1.msra.mxu0 %v395
        %452 = vmatprep.subr.mxu0 0.0
        %453 = vmatpush1.msra.mxu0 0.0
        %454 = vmatprep.subr.mxu0 0.0
        %455 = vmatpush1.msra.mxu0 0.0
        %456 = vmatprep.subr.mxu0 0.0
        %457 = vmatpush1.msra.mxu0 0.0
        %458 = vmatprep.subr.mxu0 0.0
        %459 = vmatpush1.msra.mxu0 0.0
        %460 = vmatprep.subr.mxu0 0.0
        %461 = vmatpush1.msra.mxu0 0.0
        %462 = vmatprep.subr.mxu0 0.0
        %463 = vmatpush1.msra.mxu0 0.0
        %464 = vmatprep.subr.mxu0 0.0
        %465 = vmatpush1.msra.mxu0 0.0
        %466 = vmatprep.subr.mxu0 0.0
        %467 = vmatpush1.msra.mxu0 0.0
        %468 = vmatprep.subr.mxu0 0.0
        %469 = vmatpush1.msra.mxu0 0.0
        %470 = vmatprep.subr.mxu0 0.0
        %471 = vmatpush1.msra.mxu0 0.0
        %472 = vmatprep.subr.mxu0 0.0
        %473 = vmatpush1.msra.mxu0 0.0
        %474 = vmatprep.subr.mxu0 0.0
        %475 = vmatpush1.msra.mxu0 0.0
        %476 = vmatprep.subr.mxu0 0.0
        %477 = vmatpush1.msra.mxu0 0.0
        %478 = vmatprep.subr.mxu0 0.0
        %479 = vmatpush1.msra.mxu0 0.0
        %480 = vmatprep.subr.mxu0 0.0
        %481 = vmatpush1.msra.mxu0 0.0
        %482 = vmatprep.subr.mxu0 0.0
        %483 = vmatpush1.msra.mxu0 0.0
        %484 = vmatprep.subr.mxu0 0.0
        %485 = vmatpush1.msra.mxu0 0.0
        %486 = vmatprep.subr.mxu0 0.0
        %487 = vmatpush1.msra.mxu0 0.0
        %488 = vmatprep.subr.mxu0 0.0
        %489 = vmatpush1.msra.mxu0 0.0
        %490 = vmatprep.subr.mxu0 0.0
        %491 = vmatpush1.msra.mxu0 0.0
        %492 = vmatprep.mubr.f32.mxu0 0.0
        %493 = vmatmul.mubr.f32.gmra.mrb[0].mxu0 %v417
        %v494 = vpop.f32.mrb[0].mxu0
        %v495 = vadd.f32 %v403, %v494
        %v496 = vpop.f32.mrb[0].mxu0
        %v497 = vadd.f32 %v407, %v496
        %498 = vmatprep.mubr.f32.mxu0 0.0
        %499 = vmatmul.mubr.f32.gmra.mrb[0].mxu0 %v420
        %v500 = vpop.f32.mrb[0].mxu0
        %v501 = vadd.f32 %v403, %v500
        %v502 = vpop.f32.mrb[0].mxu0
        %v503 = vadd.f32 %v407, %v502
        %504 = vmatprep.mubr.f32.mxu0 0.0
        %505 = vmatmul.mubr.f32.gmra.mrb[0].mxu0 %v423
        %v506 = vpop.f32.mrb[0].mxu0
        %v507 = vadd.f32 %v403, %v506
        %v508 = vpop.f32.mrb[0].mxu0
        %v509 = vadd.f32 %v407, %v508
        %510 = vmatprep.mubr.f32.mxu0 0.0
        %511 = vmatmul.mubr.f32.gmra.mrb[0].mxu0 %v426
        %v512 = vpop.f32.mrb[0].mxu0
        %v513 = vadd.f32 %v403, %v512
        %v514 = vpop.f32.mrb[0].mxu0
        %v515 = vadd.f32 %v407, %v514
        %516 = vdwg.mxu0
        %517 = vmatprep.subr.mxu0 0.0
        %518 = vmatpush1.msra.mxu0 %v364
        %519 = vmatprep.subr.mxu0 0.0
        %520 = vmatpush1.msra.mxu0 %v367
        %521 = vmatprep.subr.mxu0 0.0
        %522 = vmatpush1.msra.mxu0 %v370
        %523 = vmatprep.subr.mxu0 0.0
        %524 = vmatpush1.msra.mxu0 %v373
        %525 = vmatprep.subr.mxu0 0.0
        %526 = vmatpush1.msra.mxu0 %v376
        %527 = vmatprep.subr.mxu0 0.0
        %528 = vmatpush1.msra.mxu0 %v379
        %529 = vmatprep.subr.mxu0 0.0
        %530 = vmatpush1.msra.mxu0 %v382
        %531 = vmatprep.subr.mxu0 0.0
        %532 = vmatpush1.msra.mxu0 %v385
        %533 = vmatprep.subr.mxu0 0.0
        %534 = vmatpush1.msra.mxu0 %v388
        %535 = vmatprep.subr.mxu0 0.0
        %536 = vmatpush1.msra.mxu0 %v391
        %537 = vmatprep.subr.mxu0 0.0
        %538 = vmatpush1.msra.mxu0 %v394
        %539 = vmatprep.subr.mxu0 0.0
        %540 = vmatpush1.msra.mxu0 %v397
        %541 = vmatprep.subr.mxu0 0.0
        %542 = vmatpush1.msra.mxu0 0.0
        %543 = vmatprep.subr.mxu0 0.0
        %544 = vmatpush1.msra.mxu0 0.0
        %545 = vmatprep.subr.mxu0 0.0
        %546 = vmatpush1.msra.mxu0 0.0
        %547 = vmatprep.subr.mxu0 0.0
        %548 = vmatpush1.msra.mxu0 0.0
        %549 = vmatprep.subr.mxu0 0.0
        %550 = vmatpush1.msra.mxu0 0.0
        %551 = vmatprep.subr.mxu0 0.0
        %552 = vmatpush1.msra.mxu0 0.0
        %553 = vmatprep.subr.mxu0 0.0
        %554 = vmatpush1.msra.mxu0 0.0
        %555 = vmatprep.subr.mxu0 0.0
        %556 = vmatpush1.msra.mxu0 0.0
        %557 = vmatprep.subr.mxu0 0.0
        %558 = vmatpush1.msra.mxu0 0.0
        %559 = vmatprep.subr.mxu0 0.0
        %560 = vmatpush1.msra.mxu0 0.0
        %561 = vmatprep.subr.mxu0 0.0
        %562 = vmatpush1.msra.mxu0 0.0
        %563 = vmatprep.subr.mxu0 0.0
        %564 = vmatpush1.msra.mxu0 0.0
        %565 = vmatprep.subr.mxu0 0.0
        %566 = vmatpush1.msra.mxu0 0.0
        %567 = vmatprep.subr.mxu0 0.0
        %568 = vmatpush1.msra.mxu0 0.0
        %569 = vmatprep.subr.mxu0 0.0
        %570 = vmatpush1.msra.mxu0 0.0
        %571 = vmatprep.subr.mxu0 0.0
        %572 = vmatpush1.msra.mxu0 0.0
        %573 = vmatprep.subr.mxu0 0.0
        %574 = vmatpush1.msra.mxu0 0.0
        %575 = vmatprep.subr.mxu0 0.0
        %576 = vmatpush1.msra.mxu0 0.0
        %577 = vmatprep.subr.mxu0 0.0
        %578 = vmatpush1.msra.mxu0 0.0
        %579 = vmatprep.subr.mxu0 0.0
        %580 = vmatpush1.msra.mxu0 0.0
        %581 = vmatprep.mubr.f32.mxu0 0.0
        %582 = vmatmul.mubr.f32.gmra.mrb[0].mxu0 %v417
        %v583 = vpop.f32.mrb[0].mxu0
        %v584 = vadd.f32 %v411, %v583
        %v585 = vpop.f32.mrb[0].mxu0
        %586 = vmatprep.mubr.f32.mxu0 0.0
        %587 = vmatmul.mubr.f32.gmra.mrb[0].mxu0 %v420
        %v588 = vpop.f32.mrb[0].mxu0
        %v589 = vadd.f32 %v411, %v588
        %v590 = vpop.f32.mrb[0].mxu0
        %591 = vmatprep.mubr.f32.mxu0 0.0
        %592 = vmatmul.mubr.f32.gmra.mrb[0].mxu0 %v423
        %v593 = vpop.f32.mrb[0].mxu0
        %v594 = vadd.f32 %v411, %v593
        %v595 = vpop.f32.mrb[0].mxu0
        %596 = vmatprep.mubr.f32.mxu0 0.0
        %597 = vmatmul.mubr.f32.gmra.mrb[0].mxu0 %v426
        %v598 = vpop.f32.mrb[0].mxu0
        %v599 = vadd.f32 %v411, %v598
        %v600 = vpop.f32.mrb[0].mxu0
        %601 = vdwg.mxu0
        %v602 = vld [vmem:[#allocation8] sm:$0xff]
        %v603 = vld [vmem:[#allocation8 + $0x8] sm:$0xff]
        %v604 = vld [vmem:[#allocation8 + $0x10] sm:$0xff]
        %v605 = vld [vmem:[#allocation8 + $0x18] sm:$0xff]
        %v606 = vld [vmem:[#allocation8 + $0x20] sm:$0xff]
        %v607 = vld [vmem:[#allocation8 + $0x28] sm:$0xff]
        %v608 = vld [vmem:[#allocation8 + $0x30] sm:$0xff]
        %v609 = vld [vmem:[#allocation8 + $0x38] sm:$0xff]
        %v610 = vld [vmem:[#allocation8 + $0x40] sm:$0xff]
        %v611 = vld [vmem:[#allocation8 + $0x48] sm:$0xff]
        %v612 = vld [vmem:[#allocation8 + $0x50] sm:$0xff]
        %v613 = vld [vmem:[#allocation8 + $0x58] sm:$0xff]
        %v614 = vld [vmem:[#allocation8 + $0x60] sm:$0xff]
        %v615 = vld [vmem:[#allocation8 + $0x68] sm:$0xff]
        %v616 = vld [vmem:[#allocation8 + $0x70] sm:$0xff]
        %v617 = vld [vmem:[#allocation8 + $0x78] sm:$0xff]
        %v618 = vld [vmem:[#allocation8 + $0x80] sm:$0xff]
        %v619 = vld [vmem:[#allocation8 + $0x88] sm:$0xff]
        %v620 = vld [vmem:[#allocation8 + $0x90] sm:$0xff]
        %v621 = vld [vmem:[#allocation8 + $0x98] sm:$0xff]
        %v622 = vld [vmem:[#allocation8 + $0xa0] sm:$0xff]
        %v623 = vld [vmem:[#allocation8 + $0xa8] sm:$0xff]
        %v624 = vld [vmem:[#allocation8 + $0xb0] sm:$0xff]
        %v625 = vld [vmem:[#allocation8 + $0xb8] sm:$0xff]
        %v626 = vld [vmem:[#allocation8 + $0xc0] sm:$0xff]
        %v627 = vld [vmem:[#allocation8 + $0xc8] sm:$0xff]
        %v628 = vld [vmem:[#allocation8 + $0xd0] sm:$0xff]
        %v629 = vld [vmem:[#allocation8 + $0xd8] sm:$0xff]
        %v630 = vld [vmem:[#allocation8 + $0xe0] sm:$0xff]
        %v631 = vld [vmem:[#allocation8 + $0xe8] sm:$0xff]
        %v632 = vld [vmem:[#allocation8 + $0xf0] sm:$0xff]
        %v633 = vld [vmem:[#allocation8 + $0xf8] sm:$0xff]
        %v634 = vmul.f32 %v584, %v602
        %v635 = vmul.f32 %v589, %v603
        %v636 = vmul.f32 %v584, %v604
        %v637 = vmul.f32 %v589, %v605
        %v638 = vmul.f32 %v584, %v606
        %v639 = vmul.f32 %v589, %v607
        %v640 = vmul.f32 %v584, %v608
        %v641 = vmul.f32 %v589, %v609
        %v642 = vmul.f32 %v584, %v610
        %v643 = vmul.f32 %v589, %v611
        %v644 = vmul.f32 %v584, %v612
        %v645 = vmul.f32 %v589, %v613
        %v646 = vmul.f32 %v584, %v614
        %v647 = vmul.f32 %v589, %v615
        %v648 = vmul.f32 %v584, %v616
        %v649 = vmul.f32 %v589, %v617
        %v650 = vmul.f32 %v584, %v618
        %v651 = vmul.f32 %v589, %v619
        %v652 = vmul.f32 %v584, %v620
        %v653 = vmul.f32 %v589, %v621
        %v654 = vmul.f32 %v584, %v622
        %v655 = vmul.f32 %v589, %v623
        %v656 = vmul.f32 %v584, %v624
        %v657 = vmul.f32 %v589, %v625
        %v658 = vmul.f32 %v584, %v626
        %v659 = vmul.f32 %v589, %v627
        %v660 = vmul.f32 %v584, %v628
        %v661 = vmul.f32 %v589, %v629
        %v662 = vmul.f32 %v584, %v630
        %v663 = vmul.f32 %v589, %v631
        %v664 = vmul.f32 %v584, %v632
        %v665 = vmul.f32 %v589, %v633
        %v666 = vmul.f32 %v594, %v602
        %v667 = vmul.f32 %v599, %v603
        %v668 = vmul.f32 %v594, %v604
        %v669 = vmul.f32 %v599, %v605
        %v670 = vmul.f32 %v594, %v606
        %v671 = vmul.f32 %v599, %v607
        %v672 = vmul.f32 %v594, %v608
        %v673 = vmul.f32 %v599, %v609
        %v674 = vmul.f32 %v594, %v610
        %v675 = vmul.f32 %v599, %v611
        %v676 = vmul.f32 %v594, %v612
        %v677 = vmul.f32 %v599, %v613
        %v678 = vmul.f32 %v594, %v614
        %v679 = vmul.f32 %v599, %v615
        %v680 = vmul.f32 %v594, %v616
        %v681 = vmul.f32 %v599, %v617
        %v682 = vmul.f32 %v594, %v618
        %v683 = vmul.f32 %v599, %v619
        %v684 = vmul.f32 %v594, %v620
        %v685 = vmul.f32 %v599, %v621
        %v686 = vmul.f32 %v594, %v622
        %v687 = vmul.f32 %v599, %v623
        %v688 = vmul.f32 %v594, %v624
        %v689 = vmul.f32 %v599, %v625
        %v690 = vmul.f32 %v594, %v626
        %v691 = vmul.f32 %v599, %v627
        %v692 = vmul.f32 %v594, %v628
        %v693 = vmul.f32 %v599, %v629
        %v694 = vmul.f32 %v594, %v630
        %v695 = vmul.f32 %v599, %v631
        %v696 = vmul.f32 %v594, %v632
        %v697 = vmul.f32 %v599, %v633
        %v698 = vmul.f32 %v495, %v602
        %v699 = vmul.f32 %v501, %v603
        %v700 = vmul.f32 %v495, %v604
        %v701 = vmul.f32 %v501, %v605
        %v702 = vmul.f32 %v495, %v606
        %v703 = vmul.f32 %v501, %v607
        %v704 = vmul.f32 %v495, %v608
        %v705 = vmul.f32 %v501, %v609
        %v706 = vmul.f32 %v495, %v610
        %v707 = vmul.f32 %v501, %v611
        %v708 = vmul.f32 %v495, %v612
        %v709 = vmul.f32 %v501, %v613
        %v710 = vmul.f32 %v495, %v614
        %v711 = vmul.f32 %v501, %v615
        %v712 = vmul.f32 %v495, %v616
        %v713 = vmul.f32 %v501, %v617
        %v714 = vmul.f32 %v495, %v618
        %v715 = vmul.f32 %v501, %v619
        %v716 = vmul.f32 %v495, %v620
        %v717 = vmul.f32 %v501, %v621
        %v718 = vmul.f32 %v495, %v622
        %v719 = vmul.f32 %v501, %v623
        %v720 = vmul.f32 %v495, %v624
        %v721 = vmul.f32 %v501, %v625
        %v722 = vmul.f32 %v495, %v626
        %v723 = vmul.f32 %v501, %v627
        %v724 = vmul.f32 %v495, %v628
        %v725 = vmul.f32 %v501, %v629
        %v726 = vmul.f32 %v495, %v630
        %v727 = vmul.f32 %v501, %v631
        %v728 = vmul.f32 %v495, %v632
        %v729 = vmul.f32 %v501, %v633
        %v730 = vmul.f32 %v507, %v602
        %v731 = vmul.f32 %v513, %v603
        %v732 = vmul.f32 %v507, %v604
        %v733 = vmul.f32 %v513, %v605
        %v734 = vmul.f32 %v507, %v606
        %v735 = vmul.f32 %v513, %v607
        %v736 = vmul.f32 %v507, %v608
        %v737 = vmul.f32 %v513, %v609
        %v738 = vmul.f32 %v507, %v610
        %v739 = vmul.f32 %v513, %v611
        %v740 = vmul.f32 %v507, %v612
        %v741 = vmul.f32 %v513, %v613
        %v742 = vmul.f32 %v507, %v614
        %v743 = vmul.f32 %v513, %v615
        %v744 = vmul.f32 %v507, %v616
        %v745 = vmul.f32 %v513, %v617
        %v746 = vmul.f32 %v507, %v618
        %v747 = vmul.f32 %v513, %v619
        %v748 = vmul.f32 %v507, %v620
        %v749 = vmul.f32 %v513, %v621
        %v750 = vmul.f32 %v507, %v622
        %v751 = vmul.f32 %v513, %v623
        %v752 = vmul.f32 %v507, %v624
        %v753 = vmul.f32 %v513, %v625
        %v754 = vmul.f32 %v507, %v626
        %v755 = vmul.f32 %v513, %v627
        %v756 = vmul.f32 %v507, %v628
        %v757 = vmul.f32 %v513, %v629
        %v758 = vmul.f32 %v507, %v630
        %v759 = vmul.f32 %v513, %v631
        %v760 = vmul.f32 %v507, %v632
        %v761 = vmul.f32 %v513, %v633
        %762 = vmatprep.subr.mxu0 0.0
        %763 = vmatpush1.xpose.msra.mxu0 %v634
        %764 = vmatprep.subr.mxu0 0.0
        %765 = vmatpush1.xpose.msra.mxu0 %v635
        %766 = vmatprep.subr.mxu0 0.0
        %767 = vmatpush1.xpose.msra.mxu0 %v636
        %768 = vmatprep.subr.mxu0 0.0
        %769 = vmatpush1.xpose.msra.mxu0 %v637
        %770 = vmatprep.subr.mxu0 0.0
        %771 = vmatpush1.xpose.msra.mxu0 %v638
        %772 = vmatprep.subr.mxu0 0.0
        %773 = vmatpush1.xpose.msra.mxu0 %v639
        %774 = vmatprep.subr.mxu0 0.0
        %775 = vmatpush1.xpose.msra.mxu0 %v640
        %776 = vmatprep.subr.mxu0 0.0
        %777 = vmatpush1.xpose.msra.mxu0 %v641
        %778 = vmatprep.subr.mxu0 0.0
        %779 = vmatpush1.xpose.msra.mxu0 %v642
        %780 = vmatprep.subr.mxu0 0.0
        %781 = vmatpush1.xpose.msra.mxu0 %v643
        %782 = vmatprep.subr.mxu0 0.0
        %783 = vmatpush1.xpose.msra.mxu0 %v644
        %784 = vmatprep.subr.mxu0 0.0
        %785 = vmatpush1.xpose.msra.mxu0 %v645
        %786 = vmatprep.subr.mxu0 0.0
        %787 = vmatpush1.xpose.msra.mxu0 %v646
        %788 = vmatprep.subr.mxu0 0.0
        %789 = vmatpush1.xpose.msra.mxu0 %v647
        %790 = vmatprep.subr.mxu0 0.0
        %791 = vmatpush1.xpose.msra.mxu0 %v648
        %792 = vmatprep.subr.mxu0 0.0
        %793 = vmatpush1.xpose.msra.mxu0 %v649
        %794 = vmatprep.subr.mxu0 0.0
        %795 = vmatpush1.xpose.msra.mxu0 %v650
        %796 = vmatprep.subr.mxu0 0.0
        %797 = vmatpush1.xpose.msra.mxu0 %v651
        %798 = vmatprep.subr.mxu0 0.0
        %799 = vmatpush1.xpose.msra.mxu0 %v652
        %800 = vmatprep.subr.mxu0 0.0
        %801 = vmatpush1.xpose.msra.mxu0 %v653
        %802 = vmatprep.subr.mxu0 0.0
        %803 = vmatpush1.xpose.msra.mxu0 %v654
        %804 = vmatprep.subr.mxu0 0.0
        %805 = vmatpush1.xpose.msra.mxu0 %v655
        %806 = vmatprep.subr.mxu0 0.0
        %807 = vmatpush1.xpose.msra.mxu0 %v656
        %808 = vmatprep.subr.mxu0 0.0
        %809 = vmatpush1.xpose.msra.mxu0 %v657
        %810 = vmatprep.subr.mxu0 0.0
        %811 = vmatpush1.xpose.msra.mxu0 %v658
        %812 = vmatprep.subr.mxu0 0.0
        %813 = vmatpush1.xpose.msra.mxu0 %v659
        %814 = vmatprep.subr.mxu0 0.0
        %815 = vmatpush1.xpose.msra.mxu0 %v660
        %816 = vmatprep.subr.mxu0 0.0
        %817 = vmatpush1.xpose.msra.mxu0 %v661
        %818 = vmatprep.subr.mxu0 0.0
        %819 = vmatpush1.xpose.msra.mxu0 %v662
        %820 = vmatprep.subr.mxu0 0.0
        %821 = vmatpush1.xpose.msra.mxu0 %v663
        %822 = vmatprep.subr.mxu0 0.0
        %823 = vmatpush1.xpose.msra.mxu0 %v664
        %824 = vmatprep.subr.mxu0 0.0
        %825 = vmatpush1.xpose.msra.mxu0 %v665
        %826 = vmatprep.mubr.f32.mxu0 0.0
        %827 = vmatmul.mubr.f32.gmra.mrb[0].mxu0 %v497
        %v828 = vpop.f32.mrb[0].mxu0
        %v829 = vadd.f32 0.0, %v828
        %v830 = vpop.f32.mrb[0].mxu0
        %v831 = vadd.f32 0.0, %v830
        %832 = vmatprep.mubr.f32.mxu0 0.0
        %833 = vmatmul.mubr.f32.gmra.mrb[0].mxu0 %v503
        %v834 = vpop.f32.mrb[0].mxu0
        %v835 = vadd.f32 0.0, %v834
        %v836 = vpop.f32.mrb[0].mxu0
        %v837 = vadd.f32 0.0, %v836
        %838 = vdwg.mxu0
        %839 = vmatprep.subr.mxu0 0.0
        %840 = vmatpush1.xpose.msra.mxu0 %v666
        %841 = vmatprep.subr.mxu0 0.0
        %842 = vmatpush1.xpose.msra.mxu0 %v667
        %843 = vmatprep.subr.mxu0 0.0
        %844 = vmatpush1.xpose.msra.mxu0 %v668
        %845 = vmatprep.subr.mxu0 0.0
        %846 = vmatpush1.xpose.msra.mxu0 %v669
        %847 = vmatprep.subr.mxu0 0.0
        %848 = vmatpush1.xpose.msra.mxu0 %v670
        %849 = vmatprep.subr.mxu0 0.0
        %850 = vmatpush1.xpose.msra.mxu0 %v671
        %851 = vmatprep.subr.mxu0 0.0
        %852 = vmatpush1.xpose.msra.mxu0 %v672
        %853 = vmatprep.subr.mxu0 0.0
        %854 = vmatpush1.xpose.msra.mxu0 %v673
        %855 = vmatprep.subr.mxu0 0.0
        %856 = vmatpush1.xpose.msra.mxu0 %v674
        %857 = vmatprep.subr.mxu0 0.0
        %858 = vmatpush1.xpose.msra.mxu0 %v675
        %859 = vmatprep.subr.mxu0 0.0
        %860 = vmatpush1.xpose.msra.mxu0 %v676
        %861 = vmatprep.subr.mxu0 0.0
        %862 = vmatpush1.xpose.msra.mxu0 %v677
        %863 = vmatprep.subr.mxu0 0.0
        %864 = vmatpush1.xpose.msra.mxu0 %v678
        %865 = vmatprep.subr.mxu0 0.0
        %866 = vmatpush1.xpose.msra.mxu0 %v679
        %867 = vmatprep.subr.mxu0 0.0
        %868 = vmatpush1.xpose.msra.mxu0 %v680
        %869 = vmatprep.subr.mxu0 0.0
        %870 = vmatpush1.xpose.msra.mxu0 %v681
        %871 = vmatprep.subr.mxu0 0.0
        %872 = vmatpush1.xpose.msra.mxu0 %v682
        %873 = vmatprep.subr.mxu0 0.0
        %874 = vmatpush1.xpose.msra.mxu0 %v683
        %875 = vmatprep.subr.mxu0 0.0
        %876 = vmatpush1.xpose.msra.mxu0 %v684
        %877 = vmatprep.subr.mxu0 0.0
        %878 = vmatpush1.xpose.msra.mxu0 %v685
        %879 = vmatprep.subr.mxu0 0.0
        %880 = vmatpush1.xpose.msra.mxu0 %v686
        %881 = vmatprep.subr.mxu0 0.0
        %882 = vmatpush1.xpose.msra.mxu0 %v687
        %883 = vmatprep.subr.mxu0 0.0
        %884 = vmatpush1.xpose.msra.mxu0 %v688
        %885 = vmatprep.subr.mxu0 0.0
        %886 = vmatpush1.xpose.msra.mxu0 %v689
        %887 = vmatprep.subr.mxu0 0.0
        %888 = vmatpush1.xpose.msra.mxu0 %v690
        %889 = vmatprep.subr.mxu0 0.0
        %890 = vmatpush1.xpose.msra.mxu0 %v691
        %891 = vmatprep.subr.mxu0 0.0
        %892 = vmatpush1.xpose.msra.mxu0 %v692
        %893 = vmatprep.subr.mxu0 0.0
        %894 = vmatpush1.xpose.msra.mxu0 %v693
        %895 = vmatprep.subr.mxu0 0.0
        %896 = vmatpush1.xpose.msra.mxu0 %v694
        %897 = vmatprep.subr.mxu0 0.0
        %898 = vmatpush1.xpose.msra.mxu0 %v695
        %899 = vmatprep.subr.mxu0 0.0
        %900 = vmatpush1.xpose.msra.mxu0 %v696
        %901 = vmatprep.subr.mxu0 0.0
        %902 = vmatpush1.xpose.msra.mxu0 %v697
        %903 = vmatprep.mubr.f32.mxu0 0.0
        %904 = vmatmul.mubr.f32.gmra.mrb[0].mxu0 %v509
        %v905 = vpop.f32.mrb[0].mxu0
        %v906 = vadd.f32 0.0, %v905
        %v907 = vpop.f32.mrb[0].mxu0
        %v908 = vadd.f32 0.0, %v907
        %909 = vmatprep.mubr.f32.mxu0 0.0
        %910 = vmatmul.mubr.f32.gmra.mrb[0].mxu0 %v515
        %v911 = vpop.f32.mrb[0].mxu0
        %v912 = vadd.f32 0.0, %v911
        %v913 = vpop.f32.mrb[0].mxu0
        %v914 = vadd.f32 0.0, %v913
        %915 = vdwg.mxu0
        %v916 = vmax.f32 %v829, %v831
        %917 = vmax.xlane.f32.xlu0 %v916
        %v918 = vpop.xlane.xlu0 %917
        %v919 = vmax.f32 %v835, %v837
        %920 = vmax.xlane.f32.xlu0 %v919
        %v921 = vpop.xlane.xlu0 %920
        %v922 = vmax.f32 %v906, %v908
        %923 = vmax.xlane.f32.xlu0 %v922
        %v924 = vpop.xlane.xlu0 %923
        %v925 = vmax.f32 %v912, %v914
        %926 = vmax.xlane.f32.xlu0 %v925
        %v927 = vpop.xlane.xlu0 %926
        %v928 = vsub.f32 %v829, %v918
        %v929 = vsub.f32 %v831, %v918
        %v930 = vsub.f32 %v835, %v921
        %v931 = vsub.f32 %v837, %v921
        %v932 = vsub.f32 %v906, %v924
        %v933 = vsub.f32 %v908, %v924
        %v934 = vsub.f32 %v912, %v927
        %v935 = vsub.f32 %v914, %v927
        %v936 = vmul.f32 %v928, 1.442695
        %v937 = vpow.pop %v936
        %v938 = vmul.f32 %v929, 1.442695
        %v939 = vpow.pop %v938
        %v940 = vmul.f32 %v930, 1.442695
        %v941 = vpow.pop %v940
        %v942 = vmul.f32 %v931, 1.442695
        %v943 = vpow.pop %v942
        %v944 = vmul.f32 %v932, 1.442695
        %v945 = vpow.pop %v944
        %v946 = vmul.f32 %v933, 1.442695
        %v947 = vpow.pop %v946
        %v948 = vmul.f32 %v934, 1.442695
        %v949 = vpow.pop %v948
        %v950 = vmul.f32 %v935, 1.442695
        %v951 = vpow.pop %v950
        %v952 = vld [vmem:[#allocation10] sm:$0xff]
        %v953 = vld [vmem:[#allocation10 + $0x8] sm:$0xff]
        %v954 = vld [vmem:[#allocation10 + $0x10] sm:$0xff]
        %v955 = vld [vmem:[#allocation10 + $0x18] sm:$0xff]
        %v956 = vld [vmem:[#allocation10 + $0x20] sm:$0xff]
        %v957 = vld [vmem:[#allocation10 + $0x28] sm:$0xff]
        %v958 = vld [vmem:[#allocation10 + $0x30] sm:$0xff]
        %v959 = vld [vmem:[#allocation10 + $0x38] sm:$0xff]
        %v960 = vld [vmem:[#allocation10 + $0x40] sm:$0xff]
        %v961 = vld [vmem:[#allocation10 + $0x48] sm:$0xff]
        %v962 = vld [vmem:[#allocation10 + $0x50] sm:$0xff]
        %v963 = vld [vmem:[#allocation10 + $0x58] sm:$0xff]
        %v964 = vld [vmem:[#allocation10 + $0x60] sm:$0xff]
        %v965 = vld [vmem:[#allocation10 + $0x68] sm:$0xff]
        %v966 = vld [vmem:[#allocation10 + $0x70] sm:$0xff]
        %v967 = vld [vmem:[#allocation10 + $0x78] sm:$0xff]
        %v968 = vld [vmem:[#allocation10 + $0x80] sm:$0xff]
        %v969 = vld [vmem:[#allocation10 + $0x88] sm:$0xff]
        %v970 = vld [vmem:[#allocation10 + $0x90] sm:$0xff]
        %v971 = vld [vmem:[#allocation10 + $0x98] sm:$0xff]
        %v972 = vld [vmem:[#allocation10 + $0xa0] sm:$0xff]
        %v973 = vld [vmem:[#allocation10 + $0xa8] sm:$0xff]
        %v974 = vld [vmem:[#allocation10 + $0xb0] sm:$0xff]
        %v975 = vld [vmem:[#allocation10 + $0xb8] sm:$0xff]
        %v976 = vld [vmem:[#allocation10 + $0xc0] sm:$0xff]
        %v977 = vld [vmem:[#allocation10 + $0xc8] sm:$0xff]
        %v978 = vld [vmem:[#allocation10 + $0xd0] sm:$0xff]
        %v979 = vld [vmem:[#allocation10 + $0xd8] sm:$0xff]
        %v980 = vld [vmem:[#allocation10 + $0xe0] sm:$0xff]
        %v981 = vld [vmem:[#allocation10 + $0xe8] sm:$0xff]
        %v982 = vld [vmem:[#allocation10 + $0xf0] sm:$0xff]
        %v983 = vld [vmem:[#allocation10 + $0xf8] sm:$0xff]
        %v984 = vld [vmem:[#allocation10 + $0x100] sm:$0xff]
        %v985 = vld [vmem:[#allocation10 + $0x108] sm:$0xff]
        %v986 = vld [vmem:[#allocation10 + $0x110] sm:$0xff]
        %v987 = vld [vmem:[#allocation10 + $0x118] sm:$0xff]
        %v988 = vld [vmem:[#allocation10 + $0x120] sm:$0xff]
        %v989 = vld [vmem:[#allocation10 + $0x128] sm:$0xff]
        %v990 = vld [vmem:[#allocation10 + $0x130] sm:$0xff]
        %v991 = vld [vmem:[#allocation10 + $0x138] sm:$0xff]
        %v992 = vld [vmem:[#allocation10 + $0x140] sm:$0xff]
        %v993 = vld [vmem:[#allocation10 + $0x148] sm:$0xff]
        %v994 = vld [vmem:[#allocation10 + $0x150] sm:$0xff]
        %v995 = vld [vmem:[#allocation10 + $0x158] sm:$0xff]
        %v996 = vld [vmem:[#allocation10 + $0x160] sm:$0xff]
        %v997 = vld [vmem:[#allocation10 + $0x168] sm:$0xff]
        %v998 = vld [vmem:[#allocation10 + $0x170] sm:$0xff]
        %v999 = vld [vmem:[#allocation10 + $0x178] sm:$0xff]
        %v1000 = vld [vmem:[#allocation10 + $0x180] sm:$0xff]
        %v1001 = vld [vmem:[#allocation10 + $0x188] sm:$0xff]
        %v1002 = vld [vmem:[#allocation10 + $0x190] sm:$0xff]
        %v1003 = vld [vmem:[#allocation10 + $0x198] sm:$0xff]
        %v1004 = vld [vmem:[#allocation10 + $0x1a0] sm:$0xff]
        %v1005 = vld [vmem:[#allocation10 + $0x1a8] sm:$0xff]
        %v1006 = vld [vmem:[#allocation10 + $0x1b0] sm:$0xff]
        %v1007 = vld [vmem:[#allocation10 + $0x1b8] sm:$0xff]
        %v1008 = vld [vmem:[#allocation10 + $0x1c0] sm:$0xff]
        %v1009 = vld [vmem:[#allocation10 + $0x1c8] sm:$0xff]
        %v1010 = vld [vmem:[#allocation10 + $0x1d0] sm:$0xff]
        %v1011 = vld [vmem:[#allocation10 + $0x1d8] sm:$0xff]
        %v1012 = vld [vmem:[#allocation10 + $0x1e0] sm:$0xff]
        %v1013 = vld [vmem:[#allocation10 + $0x1e8] sm:$0xff]
        %v1014 = vld [vmem:[#allocation10 + $0x1f0] sm:$0xff]
        %v1015 = vld [vmem:[#allocation10 + $0x1f8] sm:$0xff]
        %1016 = vmatprep.subr.mxu0 %v953
        %1017 = vmatpush1.msra.mxu0 %v952
        %1018 = vmatprep.subr.mxu0 %v955
        %1019 = vmatpush1.msra.mxu0 %v954
        %1020 = vmatprep.subr.mxu0 %v957
        %1021 = vmatpush1.msra.mxu0 %v956
        %1022 = vmatprep.subr.mxu0 %v959
        %1023 = vmatpush1.msra.mxu0 %v958
        %1024 = vmatprep.subr.mxu0 %v961
        %1025 = vmatpush1.msra.mxu0 %v960
        %1026 = vmatprep.subr.mxu0 %v963
        %1027 = vmatpush1.msra.mxu0 %v962
        %1028 = vmatprep.subr.mxu0 %v965
        %1029 = vmatpush1.msra.mxu0 %v964
        %1030 = vmatprep.subr.mxu0 %v967
        %1031 = vmatpush1.msra.mxu0 %v966
        %1032 = vmatprep.subr.mxu0 %v969
        %1033 = vmatpush1.msra.mxu0 %v968
        %1034 = vmatprep.subr.mxu0 %v971
        %1035 = vmatpush1.msra.mxu0 %v970
        %1036 = vmatprep.subr.mxu0 %v973
        %1037 = vmatpush1.msra.mxu0 %v972
        %1038 = vmatprep.subr.mxu0 %v975
        %1039 = vmatpush1.msra.mxu0 %v974
        %1040 = vmatprep.subr.mxu0 %v977
        %1041 = vmatpush1.msra.mxu0 %v976
        %1042 = vmatprep.subr.mxu0 %v979
        %1043 = vmatpush1.msra.mxu0 %v978
        %1044 = vmatprep.subr.mxu0 %v981
        %1045 = vmatpush1.msra.mxu0 %v980
        %1046 = vmatprep.subr.mxu0 %v983
        %1047 = vmatpush1.msra.mxu0 %v982
        %1048 = vmatprep.subr.mxu0 %v985
        %1049 = vmatpush1.msra.mxu0 %v984
        %1050 = vmatprep.subr.mxu0 %v987
        %1051 = vmatpush1.msra.mxu0 %v986
        %1052 = vmatprep.subr.mxu0 %v989
        %1053 = vmatpush1.msra.mxu0 %v988
        %1054 = vmatprep.subr.mxu0 %v991
        %1055 = vmatpush1.msra.mxu0 %v990
        %1056 = vmatprep.subr.mxu0 %v993
        %1057 = vmatpush1.msra.mxu0 %v992
        %1058 = vmatprep.subr.mxu0 %v995
        %1059 = vmatpush1.msra.mxu0 %v994
        %1060 = vmatprep.subr.mxu0 %v997
        %1061 = vmatpush1.msra.mxu0 %v996
        %1062 = vmatprep.subr.mxu0 %v999
        %1063 = vmatpush1.msra.mxu0 %v998
        %1064 = vmatprep.subr.mxu0 %v1001
        %1065 = vmatpush1.msra.mxu0 %v1000
        %1066 = vmatprep.subr.mxu0 %v1003
        %1067 = vmatpush1.msra.mxu0 %v1002
        %1068 = vmatprep.subr.mxu0 %v1005
        %1069 = vmatpush1.msra.mxu0 %v1004
        %1070 = vmatprep.subr.mxu0 %v1007
        %1071 = vmatpush1.msra.mxu0 %v1006
        %1072 = vmatprep.subr.mxu0 %v1009
        %1073 = vmatpush1.msra.mxu0 %v1008
        %1074 = vmatprep.subr.mxu0 %v1011
        %1075 = vmatpush1.msra.mxu0 %v1010
        %1076 = vmatprep.subr.mxu0 %v1013
        %1077 = vmatpush1.msra.mxu0 %v1012
        %1078 = vmatprep.subr.mxu0 %v1015
        %1079 = vmatpush1.msra.mxu0 %v1014
        %1080 = vmatprep.mubr.f32.mxu0 %v939
        %1081 = vmatmul.mubr.f32.gmra.mrb[0].mxu0 %v937
        %v1082 = vpop.f32.mrb[0].mxu0
        %v1083 = vadd.f32 0.0, %v1082
        %v1084 = vpop.f32.mrb[0].mxu0
        %v1085 = vadd.f32 0.0, %v1084
        %1086 = vmatprep.mubr.f32.mxu0 %v943
        %1087 = vmatmul.mubr.f32.gmra.mrb[0].mxu0 %v941
        %v1088 = vpop.f32.mrb[0].mxu0
        %v1089 = vadd.f32 0.0, %v1088
        %v1090 = vpop.f32.mrb[0].mxu0
        %v1091 = vadd.f32 0.0, %v1090
        %1092 = vmatprep.mubr.f32.mxu0 %v947
        %1093 = vmatmul.mubr.f32.gmra.mrb[0].mxu0 %v945
        %v1094 = vpop.f32.mrb[0].mxu0
        %v1095 = vadd.f32 0.0, %v1094
        %v1096 = vpop.f32.mrb[0].mxu0
        %v1097 = vadd.f32 0.0, %v1096
        %1098 = vmatprep.mubr.f32.mxu0 %v951
        %1099 = vmatmul.mubr.f32.gmra.mrb[0].mxu0 %v949
        %v1100 = vpop.f32.mrb[0].mxu0
        %v1101 = vadd.f32 0.0, %v1100
        %v1102 = vpop.f32.mrb[0].mxu0
        %v1103 = vadd.f32 0.0, %v1102
        %1104 = vdwg.mxu0
        %v1105 = vmax.f32 %v1083, 1e-30
        %v1106 = vmax.f32 %v1085, 1e-30
        %v1107 = vmax.f32 %v1089, 1e-30
        %v1108 = vmax.f32 %v1091, 1e-30
        %v1109 = vmax.f32 %v1095, 1e-30
        %v1110 = vmax.f32 %v1097, 1e-30
        %v1111 = vmax.f32 %v1101, 1e-30
        %v1112 = vmax.f32 %v1103, 1e-30
        %v1113 = vrcp.pop %v1105
        %v1114 = vrcp.pop %v1106
        %v1115 = vrcp.pop %v1107
        %v1116 = vrcp.pop %v1108
        %v1117 = vrcp.pop %v1109
        %v1118 = vrcp.pop %v1110
        %v1119 = vrcp.pop %v1111
        %v1120 = vrcp.pop %v1112
        %v1121 = vmul.f32 %v937, %v1113
        %v1122 = vmul.f32 %v939, %v1114
        %v1123 = vmul.f32 %v941, %v1115
        %v1124 = vmul.f32 %v943, %v1116
        %v1125 = vmul.f32 %v945, %v1117
        %v1126 = vmul.f32 %v947, %v1118
        %v1127 = vmul.f32 %v949, %v1119
        %v1128 = vmul.f32 %v951, %v1120
        %1129 = vmatprep.subr.mxu0 0.0
        %1130 = vmatpush1.msra.mxu0 %v698
        %1131 = vmatprep.subr.mxu0 0.0
        %1132 = vmatpush1.msra.mxu0 %v699
        %1133 = vmatprep.subr.mxu0 0.0
        %1134 = vmatpush1.msra.mxu0 %v700
        %1135 = vmatprep.subr.mxu0 0.0
        %1136 = vmatpush1.msra.mxu0 %v701
        %1137 = vmatprep.subr.mxu0 0.0
        %1138 = vmatpush1.msra.mxu0 %v702
        %1139 = vmatprep.subr.mxu0 0.0
        %1140 = vmatpush1.msra.mxu0 %v703
        %1141 = vmatprep.subr.mxu0 0.0
        %1142 = vmatpush1.msra.mxu0 %v704
        %1143 = vmatprep.subr.mxu0 0.0
        %1144 = vmatpush1.msra.mxu0 %v705
        %1145 = vmatprep.subr.mxu0 0.0
        %1146 = vmatpush1.msra.mxu0 %v706
        %1147 = vmatprep.subr.mxu0 0.0
        %1148 = vmatpush1.msra.mxu0 %v707
        %1149 = vmatprep.subr.mxu0 0.0
        %1150 = vmatpush1.msra.mxu0 %v708
        %1151 = vmatprep.subr.mxu0 0.0
        %1152 = vmatpush1.msra.mxu0 %v709
        %1153 = vmatprep.subr.mxu0 0.0
        %1154 = vmatpush1.msra.mxu0 %v710
        %1155 = vmatprep.subr.mxu0 0.0
        %1156 = vmatpush1.msra.mxu0 %v711
        %1157 = vmatprep.subr.mxu0 0.0
        %1158 = vmatpush1.msra.mxu0 %v712
        %1159 = vmatprep.subr.mxu0 0.0
        %1160 = vmatpush1.msra.mxu0 %v713
        %1161 = vmatprep.subr.mxu0 0.0
        %1162 = vmatpush1.msra.mxu0 %v714
        %1163 = vmatprep.subr.mxu0 0.0
        %1164 = vmatpush1.msra.mxu0 %v715
        %1165 = vmatprep.subr.mxu0 0.0
        %1166 = vmatpush1.msra.mxu0 %v716
        %1167 = vmatprep.subr.mxu0 0.0
        %1168 = vmatpush1.msra.mxu0 %v717
        %1169 = vmatprep.subr.mxu0 0.0
        %1170 = vmatpush1.msra.mxu0 %v718
        %1171 = vmatprep.subr.mxu0 0.0
        %1172 = vmatpush1.msra.mxu0 %v719
        %1173 = vmatprep.subr.mxu0 0.0
        %1174 = vmatpush1.msra.mxu0 %v720
        %1175 = vmatprep.subr.mxu0 0.0
        %1176 = vmatpush1.msra.mxu0 %v721
        %1177 = vmatprep.subr.mxu0 0.0
        %1178 = vmatpush1.msra.mxu0 %v722
        %1179 = vmatprep.subr.mxu0 0.0
        %1180 = vmatpush1.msra.mxu0 %v723
        %1181 = vmatprep.subr.mxu0 0.0
        %1182 = vmatpush1.msra.mxu0 %v724
        %1183 = vmatprep.subr.mxu0 0.0
        %1184 = vmatpush1.msra.mxu0 %v725
        %1185 = vmatprep.subr.mxu0 0.0
        %1186 = vmatpush1.msra.mxu0 %v726
        %1187 = vmatprep.subr.mxu0 0.0
        %1188 = vmatpush1.msra.mxu0 %v727
        %1189 = vmatprep.subr.mxu0 0.0
        %1190 = vmatpush1.msra.mxu0 %v728
        %1191 = vmatprep.subr.mxu0 0.0
        %1192 = vmatpush1.msra.mxu0 %v729
        %1193 = vmatprep.mubr.f32.mxu0 %v1122
        %1194 = vmatmul.mubr.f32.gmra.mrb[0].mxu0 %v1121
        %v1195 = vpop.f32.mrb[0].mxu0
        %v1196 = vadd.f32 0.0, %v1195
        %v1197 = vpop.f32.mrb[0].mxu0
        %1198 = vmatprep.mubr.f32.mxu0 %v1124
        %1199 = vmatmul.mubr.f32.gmra.mrb[0].mxu0 %v1123
        %v1200 = vpop.f32.mrb[0].mxu0
        %v1201 = vadd.f32 0.0, %v1200
        %v1202 = vpop.f32.mrb[0].mxu0
        %1203 = vdwg.mxu0
        %1204 = vmatprep.subr.mxu0 0.0
        %1205 = vmatpush1.msra.mxu0 %v730
        %1206 = vmatprep.subr.mxu0 0.0
        %1207 = vmatpush1.msra.mxu0 %v731
        %1208 = vmatprep.subr.mxu0 0.0
        %1209 = vmatpush1.msra.mxu0 %v732
        %1210 = vmatprep.subr.mxu0 0.0
        %1211 = vmatpush1.msra.mxu0 %v733
        %1212 = vmatprep.subr.mxu0 0.0
        %1213 = vmatpush1.msra.mxu0 %v734
        %1214 = vmatprep.subr.mxu0 0.0
        %1215 = vmatpush1.msra.mxu0 %v735
        %1216 = vmatprep.subr.mxu0 0.0
        %1217 = vmatpush1.msra.mxu0 %v736
        %1218 = vmatprep.subr.mxu0 0.0
        %1219 = vmatpush1.msra.mxu0 %v737
        %1220 = vmatprep.subr.mxu0 0.0
        %1221 = vmatpush1.msra.mxu0 %v738
        %1222 = vmatprep.subr.mxu0 0.0
        %1223 = vmatpush1.msra.mxu0 %v739
        %1224 = vmatprep.subr.mxu0 0.0
        %1225 = vmatpush1.msra.mxu0 %v740
        %1226 = vmatprep.subr.mxu0 0.0
        %1227 = vmatpush1.msra.mxu0 %v741
        %1228 = vmatprep.subr.mxu0 0.0
        %1229 = vmatpush1.msra.mxu0 %v742
        %1230 = vmatprep.subr.mxu0 0.0
        %1231 = vmatpush1.msra.mxu0 %v743
        %1232 = vmatprep.subr.mxu0 0.0
        %1233 = vmatpush1.msra.mxu0 %v744
        %1234 = vmatprep.subr.mxu0 0.0
        %1235 = vmatpush1.msra.mxu0 %v745
        %1236 = vmatprep.subr.mxu0 0.0
        %1237 = vmatpush1.msra.mxu0 %v746
        %1238 = vmatprep.subr.mxu0 0.0
        %1239 = vmatpush1.msra.mxu0 %v747
        %1240 = vmatprep.subr.mxu0 0.0
        %1241 = vmatpush1.msra.mxu0 %v748
        %1242 = vmatprep.subr.mxu0 0.0
        %1243 = vmatpush1.msra.mxu0 %v749
        %1244 = vmatprep.subr.mxu0 0.0
        %1245 = vmatpush1.msra.mxu0 %v750
        %1246 = vmatprep.subr.mxu0 0.0
        %1247 = vmatpush1.msra.mxu0 %v751
        %1248 = vmatprep.subr.mxu0 0.0
        %1249 = vmatpush1.msra.mxu0 %v752
        %1250 = vmatprep.subr.mxu0 0.0
        %1251 = vmatpush1.msra.mxu0 %v753
        %1252 = vmatprep.subr.mxu0 0.0
        %1253 = vmatpush1.msra.mxu0 %v754
        %1254 = vmatprep.subr.mxu0 0.0
        %1255 = vmatpush1.msra.mxu0 %v755
        %1256 = vmatprep.subr.mxu0 0.0
        %1257 = vmatpush1.msra.mxu0 %v756
        %1258 = vmatprep.subr.mxu0 0.0
        %1259 = vmatpush1.msra.mxu0 %v757
        %1260 = vmatprep.subr.mxu0 0.0
        %1261 = vmatpush1.msra.mxu0 %v758
        %1262 = vmatprep.subr.mxu0 0.0
        %1263 = vmatpush1.msra.mxu0 %v759
        %1264 = vmatprep.subr.mxu0 0.0
        %1265 = vmatpush1.msra.mxu0 %v760
        %1266 = vmatprep.subr.mxu0 0.0
        %1267 = vmatpush1.msra.mxu0 %v761
        %1268 = vmatprep.mubr.f32.mxu0 %v1126
        %1269 = vmatmul.mubr.f32.gmra.mrb[0].mxu0 %v1125
        %v1270 = vpop.f32.mrb[0].mxu0
        %v1271 = vadd.f32 0.0, %v1270
        %v1272 = vpop.f32.mrb[0].mxu0
        %1273 = vmatprep.mubr.f32.mxu0 %v1128
        %1274 = vmatmul.mubr.f32.gmra.mrb[0].mxu0 %v1127
        %v1275 = vpop.f32.mrb[0].mxu0
        %v1276 = vadd.f32 0.0, %v1275
        %v1277 = vpop.f32.mrb[0].mxu0
        %1278 = vdwg.mxu0
        %v1279 = vld [vmem:[#allocation7] sm:$0xff]
        %v1280 = vld [vmem:[#allocation7 + $0x8] sm:$0xff]
        %v1281 = vld [vmem:[#allocation7 + $0x10] sm:$0xff]
        %v1282 = vld [vmem:[#allocation7 + $0x18] sm:$0xff]
        %v1283 = vld [vmem:[#allocation7 + $0x20] sm:$0xff]
        %v1284 = vld [vmem:[#allocation7 + $0x28] sm:$0xff]
        %v1285 = vld [vmem:[#allocation7 + $0x30] sm:$0xff]
        %v1286 = vld [vmem:[#allocation7 + $0x38] sm:$0xff]
        %v1287 = vld [vmem:[#allocation7 + $0x40] sm:$0xff]
        %v1288 = vld [vmem:[#allocation7 + $0x48] sm:$0xff]
        %v1289 = vld [vmem:[#allocation7 + $0x50] sm:$0xff]
        %v1290 = vld [vmem:[#allocation7 + $0x58] sm:$0xff]
        %v1291 = vld [vmem:[#allocation7 + $0x60] sm:$0xff]
        %v1292 = vld [vmem:[#allocation7 + $0x68] sm:$0xff]
        %v1293 = vld [vmem:[#allocation7 + $0x70] sm:$0xff]
        %v1294 = vld [vmem:[#allocation7 + $0x78] sm:$0xff]
        %v1295 = vld [vmem:[%s4] sm:$0x1]
        %v1297 = vlaneseq
        %v1298 = vshrl.u32 %v1297, 7
        %v1299 = vsub.s32 0, %v1298
        %v1300 = vrot.slane %v1295, %v1299
        %1302 = vmatprep.subr.mxu0 0.0
        %1303 = vmatpush1.msra.mxu0 %v1279
        %1304 = vmatprep.subr.mxu0 0.0
        %1305 = vmatpush1.msra.mxu0 %v1280
        %1306 = vmatprep.subr.mxu0 0.0
        %1307 = vmatpush1.msra.mxu0 %v1281
        %1308 = vmatprep.subr.mxu0 0.0
        %1309 = vmatpush1.msra.mxu0 %v1282
        %1310 = vmatprep.subr.mxu0 0.0
        %1311 = vmatpush1.msra.mxu0 %v1283
        %1312 = vmatprep.subr.mxu0 0.0
        %1313 = vmatpush1.msra.mxu0 %v1284
        %1314 = vmatprep.subr.mxu0 0.0
        %1315 = vmatpush1.msra.mxu0 %v1285
        %1316 = vmatprep.subr.mxu0 0.0
        %1317 = vmatpush1.msra.mxu0 %v1286
        %1318 = vmatprep.subr.mxu0 0.0
        %1319 = vmatpush1.msra.mxu0 %v1287
        %1320 = vmatprep.subr.mxu0 0.0
        %1321 = vmatpush1.msra.mxu0 %v1288
        %1322 = vmatprep.subr.mxu0 0.0
        %1323 = vmatpush1.msra.mxu0 %v1289
        %1324 = vmatprep.subr.mxu0 0.0
        %1325 = vmatpush1.msra.mxu0 %v1290
        %1326 = vmatprep.subr.mxu0 0.0
        %1327 = vmatpush1.msra.mxu0 %v1291
        %1328 = vmatprep.subr.mxu0 0.0
        %1329 = vmatpush1.msra.mxu0 %v1292
        %1330 = vmatprep.subr.mxu0 0.0
        %1331 = vmatpush1.msra.mxu0 %v1293
        %1332 = vmatprep.subr.mxu0 0.0
        %1333 = vmatpush1.msra.mxu0 %v1294
        %1334 = vmatprep.subr.mxu0 0.0
        %1335 = vmatpush1.msra.mxu0 0.0
        %1336 = vmatprep.subr.mxu0 0.0
        %1337 = vmatpush1.msra.mxu0 0.0
        %1338 = vmatprep.subr.mxu0 0.0
        %1339 = vmatpush1.msra.mxu0 0.0
        %1340 = vmatprep.subr.mxu0 0.0
        %1341 = vmatpush1.msra.mxu0 0.0
        %1342 = vmatprep.subr.mxu0 0.0
        %1343 = vmatpush1.msra.mxu0 0.0
        %1344 = vmatprep.subr.mxu0 0.0
        %1345 = vmatpush1.msra.mxu0 0.0
        %1346 = vmatprep.subr.mxu0 0.0
        %1347 = vmatpush1.msra.mxu0 0.0
        %1348 = vmatprep.subr.mxu0 0.0
        %1349 = vmatpush1.msra.mxu0 0.0
        %1350 = vmatprep.subr.mxu0 0.0
        %1351 = vmatpush1.msra.mxu0 0.0
        %1352 = vmatprep.subr.mxu0 0.0
        %1353 = vmatpush1.msra.mxu0 0.0
        %1354 = vmatprep.subr.mxu0 0.0
        %1355 = vmatpush1.msra.mxu0 0.0
        %1356 = vmatprep.subr.mxu0 0.0
        %1357 = vmatpush1.msra.mxu0 0.0
        %1358 = vmatprep.subr.mxu0 0.0
        %1359 = vmatpush1.msra.mxu0 0.0
        %1360 = vmatprep.subr.mxu0 0.0
        %1361 = vmatpush1.msra.mxu0 0.0
        %1362 = vmatprep.subr.mxu0 0.0
        %1363 = vmatpush1.msra.mxu0 0.0
        %1364 = vmatprep.subr.mxu0 0.0
        %1365 = vmatpush1.msra.mxu0 0.0
        %1366 = vmatprep.mubr.f32.mxu0 0.0
        %1367 = vmatmul.mubr.f32.gmra.mrb[0].mxu0 %v1196
        %v1368 = vpop.f32.mrb[0].mxu0
        %v1369 = vadd.f32 %v1300, %v1368
        %v1370 = vpop.f32.mrb[0].mxu0
        %1371 = vmatprep.mubr.f32.mxu0 0.0
        %1372 = vmatmul.mubr.f32.gmra.mrb[0].mxu0 %v1201
        %v1373 = vpop.f32.mrb[0].mxu0
        %v1374 = vadd.f32 %v1300, %v1373
        %v1375 = vpop.f32.mrb[0].mxu0
        %1376 = vmatprep.mubr.f32.mxu0 0.0
        %1377 = vmatmul.mubr.f32.gmra.mrb[0].mxu0 %v1271
        %v1378 = vpop.f32.mrb[0].mxu0
        %v1379 = vadd.f32 %v1300, %v1378
        %v1380 = vpop.f32.mrb[0].mxu0
        %1381 = vmatprep.mubr.f32.mxu0 0.0
        %1382 = vmatmul.mubr.f32.gmra.mrb[0].mxu0 %v1276
        %v1383 = vpop.f32.mrb[0].mxu0
        %v1384 = vadd.f32 %v1300, %v1383
        %v1385 = vpop.f32.mrb[0].mxu0
        %1386 = vdwg.mxu0
        %1387 = vst [vmem:[%s355] sm:$0xff] %v1369
        %1388 = vst [vmem:[%s355 + $0x8] sm:$0xff] %v1374
        %1389 = vst [vmem:[%s355 + $0x10] sm:$0xff] %v1379
        %1390 = vst [vmem:[%s355 + $0x18] sm:$0xff] %v1384
        %s1391 = sand.u32 %s186, 1
        %s1392 = scalar_lea.sflag [#allocation4], %s1391
        %s1393 = sand.u32 %s186, 1
        %s1394 = smul.addr %s1393, 32
        %s1395 = scalar_lea.vmem [#allocation11], %s1394
        // Predicated region
        $region69: #{tpu_custom_call.1} parent=47 // pred_check
          %p1396 = pneg %p196
        $region70: #{tpu_custom_call.1} parent=47 // pred_check_branch
          %1398 = sbr.rel (%p1396) target = $region72
        $region71: #{tpu_custom_call.1} parent=47 // pred_region
          %s1399 = smul.u32 2, %s26
          %s1401 = ssub.s32 512, 512
          %1402 = vsyncadd %s1392, %s1401
          %s1403 = smul.addr %s1399, 2
          %s1404 = smul.addr %s1403, 128
          %s1405 = scalar_lea.hbm %s7, %s1404
          %s1406 = sshll.u32 %s1395, 4
          %s1407 = int_to_ptr.vmem [resolvable:$true] %s1406
          %1412 = dma.vmem_to_hbm [thread:$0]  %s1407, 512, %s1405, %s1392, 128, 128, 8
        $region72: #{tpu_custom_call.1} parent=47 // pred_fallthru
          _
      $region48: #{tpu_custom_call.1} parent=5 // pred_fallthru
        _
      %p1413 = scmp.le.s32.totalorder 2, %s21
      // Predicated region
      $region73: #{tpu_custom_call.1} parent=5 // pred_check
        %p1414 = pneg %p1413
      $region74: #{tpu_custom_call.1} parent=5 // pred_check_branch
        %1416 = sbr.rel (%p1414) target = $region76
      $region75: #{tpu_custom_call.1} parent=5 // pred_region
        %s1417 = ssub.s32 %s21, 2
        // Predicated region
        $region77: #{tpu_custom_call.1} parent=75 // pred_check
          %p1418 = pneg %p202
        $region78: #{tpu_custom_call.1} parent=75 // pred_check_branch
          %1420 = sbr.rel (%p1418) target = $region80
        $region79: #{tpu_custom_call.1} parent=75 // pred_region
          %s1421 = sand.u32 %s187, 1
          %s1422 = scalar_lea.sflag [#allocation4], %s1421
          %s1423 = sand.u32 %s187, 1
          %s1424 = smul.addr %s1423, 32
          %s1425 = scalar_lea.vmem [#allocation11], %s1424
          %1426 = dma.done %s1422, 512
        $region80: #{tpu_custom_call.1} parent=75 // pred_fallthru
          _
      $region76: #{tpu_custom_call.1} parent=5 // pred_fallthru
        _
    $region6: #{tpu_custom_call.1} parent=1 // loop_footer
      %s25 = sadd.s32 1, %s21
    $region7: #{tpu_custom_call.1} parent=1 // loop_footer_branch
      %20 = sbr.rel target = $region3
    $region8: #{tpu_custom_call.1} parent=1 // loop_exit
      _
    %1427 = vsyncpa [#allocation3], 1
    %s1428 = scalar_lea.sflag [#allocation3], 1
    %1429 = vsyncpa %s1428, 1
    %1430 = vsyncpa [#allocation6], 1
    %1431 = vsyncpa [#allocation9], 1
    %1432 = vsyncpa [#allocation4], 1
    %s1433 = scalar_lea.sflag [#allocation4], 1
    %1434 = vsyncpa %s1433, 1

</llo_original>
